<compile_context>
chip_gen: v5e
topology: v5e:2x2
jax: 0.10.0
libtpu: 0.0.40
codegen_flags: <defaults>
</compile_context>

<pallas_src>
import jax
import jax.numpy as jnp
from jax.experimental import pallas as pl
from jax.experimental.pallas import tpu as pltpu

IN_FEATURES = 64 * 9 * 9   # 5184
H1 = 100
H2 = 31
OUT = 1
BN_EPS = 1e-5


def relater_kernel(x_ref, w1_ref, b1_ref, w2_ref, b2_ref, w3_ref, b3_ref, o_ref):
    """Whole MLP head fused; one batch tile per grid step, weights resident."""
    # Linear(5184 -> 100) with eval-mode BatchNorm folded into w1/b1.
    # x is streamed as f32 (single HBM read); cast to bf16 in-kernel (hidden under
    # the tile DMA) so the MXU runs at the bf16 rate; f32 accumulation.
    x_bf = x_ref[...].astype(jnp.bfloat16)
    h = jnp.dot(x_bf, w1_ref[...], preferred_element_type=jnp.float32) + b1_ref[...]
    h = jnp.maximum(h, 0.0)                                  # ReLU

    # Linear(100 -> 31); Dropout is identity in eval mode; ReLU.
    h = jnp.dot(h, w2_ref[...], preferred_element_type=jnp.float32) + b2_ref[...]
    h = jnp.maximum(h, 0.0)

    # Linear(31 -> 1) + Sigmoid (exp and approx reciprocal both use the EUP slot).
    h = jnp.dot(h, w3_ref[...], preferred_element_type=jnp.float32) + b3_ref[...]
    o_ref[...] = pl.reciprocal(1.0 + jnp.exp(-h), approx=True)


def _round_up(x, m):
    return (x + m - 1) // m * m


def _device_kind():
    try:
        return jax.devices()[0].device_kind.lower()
    except Exception:
        return ""


def _default_batch_tile(kind):
    """Generation-appropriate batch tile (rows per grid step) for f32 x input."""
    if "v5" in kind:
        return 512     # ~21 MiB x double buffer; vmem_limit raised explicitly below
    if "v6" in kind:
        return 1024    # ~42.5 MiB x double buffer; 128 MiB physical, limit raised below
    return 512         # v7x (64 MiB per-TC physical) and anything unknown


def relater_office_forward(x, params):
    """x: [B, 5184] float32 -> [B, 1] float32 (eval-mode forward)."""
    (w1, b1, gamma, beta, run_mean, run_var, w2, b2, w3, b3) = params
    B = x.shape[0]

    # ---------------- parameter glue (pure JAX, outside the kernel) ----------------
    # Fold eval-mode BatchNorm1d(100) into the first Linear (affine per feature).
    bn_scale = gamma / jnp.sqrt(run_var + BN_EPS)              # [H1]
    bn_shift = beta - run_mean * bn_scale                      # [H1]
    w1f = (w1 * bn_scale[None, :]).astype(jnp.bfloat16)        # [5184, 100] bf16 (tiny)
    b1f = (b1 * bn_scale + bn_shift).reshape(1, H1)            # [1, 100]    f32

    # ---------------- batch tiling (no padding; ragged last block) ----------------
    kind = _device_kind()
    TB = min(_default_batch_tile(kind), _round_up(B, 8))       # multiple of 8 sublanes
    if "v7" in kind:
        # Guarantee >= 2 grid steps so both v7x TensorCores get sharded work.
        TB = max(8, min(TB, _round_up(pl.cdiv(B, 2), 8)))
    grid = (pl.cdiv(B, TB),)

    # ---------------- compiler params / cost estimate ----------------
    weight_bytes = (w1f.size * 2 + b1f.size * 4 + w2.size * 4 + b2.size * 4
                    + w3.size * 4 + b3.size * 4)
    # f32 x tile double-buffered; weights resident (counted double-buffered + lane-pad
    # margin); lane-padded output double buffer; margin for compiler scratch.
    vmem_needed = (2 * TB * IN_FEATURES * 4
                   + 4 * weight_bytes
                   + 2 * TB * 128 * 4
                   + (4 << 20))
    # Always set the limit: v5e's scoped default is only 16 MiB, v6e/v7x is 32 MiB.
    vmem_limit = max(int(vmem_needed), 32 << 20)
    compiler_params = pltpu.CompilerParams(
        dimension_semantics=("parallel",),
        vmem_limit_bytes=vmem_limit,
    )

    cost = pl.CostEstimate(
        flops=2 * B * (IN_FEATURES * H1 + H1 * H2 + H2 * OUT),
        transcendentals=B * OUT,
        bytes_accessed=x.size * 4 + weight_bytes + B * OUT * 4,
    )

    out = pl.pallas_call(
        relater_kernel,
        out_shape=jax.ShapeDtypeStruct((B, OUT), jnp.float32),
        grid=grid,
        in_specs=[
            pl.BlockSpec((TB, IN_FEATURES), lambda i: (i, 0)),   # x: streamed f32 tiles
            pl.BlockSpec((IN_FEATURES, H1), lambda i: (0, 0)),   # w1 (BN folded, bf16)
            pl.BlockSpec((1, H1), lambda i: (0, 0)),             # b1 (BN folded)
            pl.BlockSpec((H1, H2), lambda i: (0, 0)),            # w2
            pl.BlockSpec((1, H2), lambda i: (0, 0)),             # b2
            pl.BlockSpec((H2, OUT), lambda i: (0, 0)),           # w3
            pl.BlockSpec((1, OUT), lambda i: (0, 0)),            # b3
        ],
        out_specs=pl.BlockSpec((TB, OUT), lambda i: (i, 0)),
        compiler_params=compiler_params,
        cost_estimate=cost,
    )(x, w1f, b1f, w2, b2.reshape(1, H2), w3, b3.reshape(1, OUT))

    return out


def init_params(key):
    """Deterministic init, PyTorch-Linear-style uniform(-1/sqrt(fan_in), 1/sqrt(fan_in)).
    Weights are stored as [in_features, out_features]."""
    ks = jax.random.split(key, 6)

    def lin(kw, kb, fan_in, fan_out):
        bound = 1.0 / jnp.sqrt(fan_in)
        w = jax.random.uniform(kw, (fan_in, fan_out), jnp.float32, -bound, bound)
        b = jax.random.uniform(kb, (fan_out,), jnp.float32, -bound, bound)
        return w, b

    w1, b1 = lin(ks[0], ks[1], IN_FEATURES, H1)
    w2, b2 = lin(ks[2], ks[3], H1, H2)
    w3, b3 = lin(ks[4], ks[5], H2, OUT)

    # BatchNorm1d(100) default init: gamma=1, beta=0, running_mean=0, running_var=1
    gamma = jnp.ones((H1,), jnp.float32)
    beta = jnp.zeros((H1,), jnp.float32)
    run_mean = jnp.zeros((H1,), jnp.float32)
    run_var = jnp.ones((H1,), jnp.float32)

    return (w1, b1, gamma, beta, run_mean, run_var, w2, b2, w3, b3)


def reference_forward(x, params):
    """Pure-JAX f32 reference of the same (eval-mode) forward pass."""
    (w1, b1, gamma, beta, run_mean, run_var, w2, b2, w3, b3) = params
    h = x @ w1 + b1
    h = (h - run_mean) / jnp.sqrt(run_var + BN_EPS) * gamma + beta
    h = jnp.maximum(h, 0.0)
    h = h @ w2 + b2
    h = jnp.maximum(h, 0.0)
    h = h @ w3 + b3
    return 1.0 / (1.0 + jnp.exp(-h))


if __name__ == "__main__":
    key = jax.random.PRNGKey(0)
    k_x, k_p = jax.random.split(key)
    params = init_params(k_p)

    # Main check: tile-aligned batch.
    B = 8
    x = jax.random.normal(k_x, (B, IN_FEATURES), jnp.float32)
    out = jax.block_until_ready(relater_office_forward(x, params))
    ref = reference_forward(x, params)
    assert out.shape == (B, OUT), out.shape
    # bf16 x/w1 matmul + approx reciprocal -> looser tolerance vs f32 reference.
    assert jnp.max(jnp.abs(out - ref)) < 5e-2, (out, ref)

    # Secondary check: ragged batch (B not a multiple of the tile) exercises the
    # no-pad boundary-masked path.
    B2 = 13
    x2 = jax.random.normal(jax.random.PRNGKey(1), (B2, IN_FEATURES), jnp.float32)
    out2 = jax.block_until_ready(relater_office_forward(x2, params))
    ref2 = reference_forward(x2, params)
    assert out2.shape == (B2, OUT), out2.shape
    assert jnp.max(jnp.abs(out2 - ref2)) < 5e-2, (out2, ref2)

    print("KERNEL_OK")
</pallas_src>

<mosaic_0001>
module attributes {stable_mosaic.version = 11 : i64} {
  func.func @relater_kernel(%arg0: i32, %arg1: memref<8x5184xf32, #tpu.memory_space<vmem>>, %arg2: memref<5184x100xbf16, #tpu.memory_space<vmem>>, %arg3: memref<1x100xf32, #tpu.memory_space<vmem>>, %arg4: memref<100x31xf32, #tpu.memory_space<vmem>>, %arg5: memref<1x31xf32, #tpu.memory_space<vmem>>, %arg6: memref<31x1xf32, #tpu.memory_space<vmem>>, %arg7: memref<1x1xf32, #tpu.memory_space<vmem>>, %arg8: memref<8x1xf32, #tpu.memory_space<vmem>>) attributes {dimension_semantics = [#tpu.dimension_semantics<parallel>], iteration_bounds = array<i64: 1>, scalar_prefetch = 0 : i64, scratch_operands = 0 : i64, tpu.core_type = #tpu.core_type<tc>, window_params = [{transform_indices = @transform_0, window_bounds = array<i64: 8, 5184>}, {pipeline_mode = #tpu.pipeline_mode<synchronous>, transform_indices = @transform_1, window_bounds = array<i64: 5184, 100>}, {pipeline_mode = #tpu.pipeline_mode<synchronous>, transform_indices = @transform_2, window_bounds = array<i64: 1, 100>}, {pipeline_mode = #tpu.pipeline_mode<synchronous>, transform_indices = @transform_3, window_bounds = array<i64: 100, 31>}, {pipeline_mode = #tpu.pipeline_mode<synchronous>, transform_indices = @transform_4, window_bounds = array<i64: 1, 31>}, {pipeline_mode = #tpu.pipeline_mode<synchronous>, transform_indices = @transform_5, window_bounds = array<i64: 31, 1>}, {pipeline_mode = #tpu.pipeline_mode<synchronous>, transform_indices = @transform_6, window_bounds = array<i64: 1, 1>}, {transform_indices = @transform_7, window_bounds = array<i64: 8, 1>}]} {
    %c0 = arith.constant 0 : index
    %c0_0 = arith.constant 0 : index
    %0 = vector.load %arg1[%c0, %c0_0] : memref<8x5184xf32, #tpu.memory_space<vmem>>, vector<8x5184xf32>
    %1 = arith.truncf %0 : vector<8x5184xf32> to vector<8x5184xbf16>
    %c0_1 = arith.constant 0 : index
    %c0_2 = arith.constant 0 : index
    %2 = vector.load %arg2[%c0_1, %c0_2] : memref<5184x100xbf16, #tpu.memory_space<vmem>>, vector<5184x100xbf16>
    %cst = arith.constant dense<0.000000e+00> : vector<8x100xf32>
    %3 = tpu.matmul %1, %2, %cst {dimension_numbers = #tpu.dot_dimension_numbers<[1], [0], [0], [1], [0, 0, 1, 1], [], []>} : vector<8x5184xbf16>, vector<5184x100xbf16>, vector<8x100xf32> -> vector<8x100xf32>
    %c0_3 = arith.constant 0 : index
    %c0_4 = arith.constant 0 : index
    %4 = vector.load %arg3[%c0_3, %c0_4] : memref<1x100xf32, #tpu.memory_space<vmem>>, vector<1x100xf32>
    %5 = vector.broadcast %4 : vector<1x100xf32> to vector<8x100xf32>
    %6 = arith.addf %3, %5 : vector<8x100xf32>
    %cst_5 = arith.constant 0.000000e+00 : f32
    %7 = vector.broadcast %cst_5 : f32 to vector<8x100xf32>
    %8 = arith.maximumf %6, %7 : vector<8x100xf32>
    %c0_6 = arith.constant 0 : index
    %c0_7 = arith.constant 0 : index
    %9 = vector.load %arg4[%c0_6, %c0_7] : memref<100x31xf32, #tpu.memory_space<vmem>>, vector<100x31xf32>
    %cst_8 = arith.constant dense<0.000000e+00> : vector<8x31xf32>
    %10 = tpu.matmul %8, %9, %cst_8 {dimension_numbers = #tpu.dot_dimension_numbers<[1], [0], [0], [1], [0, 0, 1, 1], [], []>} : vector<8x100xf32>, vector<100x31xf32>, vector<8x31xf32> -> vector<8x31xf32>
    %c0_9 = arith.constant 0 : index
    %c0_10 = arith.constant 0 : index
    %11 = vector.load %arg5[%c0_9, %c0_10] : memref<1x31xf32, #tpu.memory_space<vmem>>, vector<1x31xf32>
    %12 = vector.broadcast %11 : vector<1x31xf32> to vector<8x31xf32>
    %13 = arith.addf %10, %12 : vector<8x31xf32>
    %cst_11 = arith.constant 0.000000e+00 : f32
    %14 = vector.broadcast %cst_11 : f32 to vector<8x31xf32>
    %15 = arith.maximumf %13, %14 : vector<8x31xf32>
    %c0_12 = arith.constant 0 : index
    %c0_13 = arith.constant 0 : index
    %16 = vector.load %arg6[%c0_12, %c0_13] : memref<31x1xf32, #tpu.memory_space<vmem>>, vector<31x1xf32>
    %cst_14 = arith.constant dense<0.000000e+00> : vector<8x1xf32>
    %17 = tpu.matmul %15, %16, %cst_14 {dimension_numbers = #tpu.dot_dimension_numbers<[1], [0], [0], [1], [0, 0, 1, 1], [], []>} : vector<8x31xf32>, vector<31x1xf32>, vector<8x1xf32> -> vector<8x1xf32>
    %c0_15 = arith.constant 0 : index
    %c0_16 = arith.constant 0 : index
    %18 = vector.load %arg7[%c0_15, %c0_16] : memref<1x1xf32, #tpu.memory_space<vmem>>, vector<1x1xf32>
    %19 = vector.broadcast %18 : vector<1x1xf32> to vector<8x1xf32>
    %20 = arith.addf %17, %19 : vector<8x1xf32>
    %cst_17 = arith.constant 0.000000e+00 : f32
    %21 = vector.broadcast %cst_17 : f32 to vector<8x1xf32>
    %22 = arith.subf %21, %20 : vector<8x1xf32>
    %23 = math.exp %22 : vector<8x1xf32>
    %cst_18 = arith.constant 1.000000e+00 : f32
    %24 = vector.broadcast %cst_18 : f32 to vector<8x1xf32>
    %25 = arith.addf %24, %23 : vector<8x1xf32>
    %26 = tpu.reciprocal %25 {approx = true} : vector<8x1xf32> -> vector<8x1xf32>
    %c0_19 = arith.constant 0 : index
    %c0_20 = arith.constant 0 : index
    %27 = vector.load %arg8[%c0_19, %c0_20] : memref<8x1xf32, #tpu.memory_space<vmem>>, vector<8x1xf32>
    tpu.vector_store %arg8[%c0_19, %c0_20], %26 {strides = array<i32>} : memref<8x1xf32, #tpu.memory_space<vmem>>, vector<8x1xf32>,
    return
  }
  func.func @transform_0(%arg0: i32) -> (i32, i32) {
    %c0_i32 = arith.constant 0 : i32
    %c0_i32_0 = arith.constant 0 : i32
    return %arg0, %c0_i32 : i32, i32
  }
  func.func @transform_1(%arg0: i32) -> (i32, i32) {
    %c0_i32 = arith.constant 0 : i32
    %c0_i32_0 = arith.constant 0 : i32
    %c0_i32_1 = arith.constant 0 : i32
    return %c0_i32, %c0_i32_0 : i32, i32
  }
  func.func @transform_2(%arg0: i32) -> (i32, i32) {
    %c0_i32 = arith.constant 0 : i32
    %c0_i32_0 = arith.constant 0 : i32
    %c0_i32_1 = arith.constant 0 : i32
    return %c0_i32, %c0_i32_0 : i32, i32
  }
  func.func @transform_3(%arg0: i32) -> (i32, i32) {
    %c0_i32 = arith.constant 0 : i32
    %c0_i32_0 = arith.constant 0 : i32
    %c0_i32_1 = arith.constant 0 : i32
    return %c0_i32, %c0_i32_0 : i32, i32
  }
  func.func @transform_4(%arg0: i32) -> (i32, i32) {
    %c0_i32 = arith.constant 0 : i32
    %c0_i32_0 = arith.constant 0 : i32
    %c0_i32_1 = arith.constant 0 : i32
    return %c0_i32, %c0_i32_0 : i32, i32
  }
  func.func @transform_5(%arg0: i32) -> (i32, i32) {
    %c0_i32 = arith.constant 0 : i32
    %c0_i32_0 = arith.constant 0 : i32
    %c0_i32_1 = arith.constant 0 : i32
    return %c0_i32, %c0_i32_0 : i32, i32
  }
  func.func @transform_6(%arg0: i32) -> (i32, i32) {
    %c0_i32 = arith.constant 0 : i32
    %c0_i32_0 = arith.constant 0 : i32
    %c0_i32_1 = arith.constant 0 : i32
    return %c0_i32, %c0_i32_0 : i32, i32
  }
  func.func @transform_7(%arg0: i32) -> (i32, i32) {
    %c0_i32 = arith.constant 0 : i32
    %c0_i32_0 = arith.constant 0 : i32
    return %arg0, %c0_i32 : i32, i32
  }
}

</mosaic_0001>

<llo_original>
// kernel: tpu_custom_call.1
$region0: #{tpu_custom_call.1}
  #allocation0 [shape = 'u32[]', space=smem, size = 0x4, offset = 0x4, fixed_abs, tag = 'smem constant byte address 0x4 - core index']
  #allocation1 [shape = 'u32[72,128]{1,0:T(1,128)}', space=vmem, size = 0x9000, scoped, tag = 'internal scratch']
  #allocation2 [shape = 'f32[1,1]{1,0:T(1,128)S(1)}', space=vmem, size = 0x200, scoped, tag = 'scoped memory for tpu_custom_call.1']
  %s0 = inlined_call_operand.vmem [shape: f32[8,5184], index: 0, kind: input, shape index: {}]
  %s1 = inlined_call_operand.vmem [shape: bf16[5184,100], index: 1, kind: input, shape index: {}]
  %s2 = inlined_call_operand.vmem [shape: f32[1,100], index: 2, kind: input, shape index: {}]
  %s3 = inlined_call_operand.vmem [shape: f32[100,31], index: 3, kind: input, shape index: {}]
  %s4 = inlined_call_operand.vmem [shape: f32[1,31], index: 4, kind: input, shape index: {}]
  %s5 = inlined_call_operand.vmem [shape: f32[31,1], index: 5, kind: input, shape index: {}]
  %s6 = inlined_call_operand.<no memory space> [shape: f32[1,1], index: 6, kind: input, shape index: {}]
  %s7 = inlined_call_operand.vmem [shape: f32[8,1], index: 7, kind: output, shape index: {}]
  %s8 = sld [smem:[#allocation0]]
  $region38: #{tpu_custom_call.1} parent=0
    _
  %s10 = ssub.s32 1, %s8
  %s11 = scalar_select 0, %s10, %s8
  %v12 = vstv %s6
  %13 = vst [vmem:[#allocation2] sm:$0x1] %v12
  // Predicated region
  $region2: #{tpu_custom_call.1} parent=0 // pred_check
    _
  $region3: #{tpu_custom_call.1} parent=0 // pred_check_branch
    %15 = sbr.rel (0) target = $region5
  $region4: #{tpu_custom_call.1} parent=0 // pred_region
    _
  $region5: #{tpu_custom_call.1} parent=0 // pred_fallthru
    _
  // Predicated region
  $region6: #{tpu_custom_call.1} parent=0 // pred_check
    _
  $region7: #{tpu_custom_call.1} parent=0 // pred_check_branch
    %17 = sbr.rel (0) target = $region9
  $region8: #{tpu_custom_call.1} parent=0 // pred_region
    _
  $region9: #{tpu_custom_call.1} parent=0 // pred_fallthru
    _
  // Predicated region
  $region10: #{tpu_custom_call.1} parent=0 // pred_check
    _
  $region11: #{tpu_custom_call.1} parent=0 // pred_check_branch
    %19 = sbr.rel (0) target = $region13
  $region12: #{tpu_custom_call.1} parent=0 // pred_region
    _
  $region13: #{tpu_custom_call.1} parent=0 // pred_fallthru
    _
  // Predicated region
  $region14: #{tpu_custom_call.1} parent=0 // pred_check
    _
  $region15: #{tpu_custom_call.1} parent=0 // pred_check_branch
    %21 = sbr.rel (0) target = $region17
  $region16: #{tpu_custom_call.1} parent=0 // pred_region
    _
  $region17: #{tpu_custom_call.1} parent=0 // pred_fallthru
    _
  // Predicated region
  $region18: #{tpu_custom_call.1} parent=0 // pred_check
    _
  $region19: #{tpu_custom_call.1} parent=0 // pred_check_branch
    %23 = sbr.rel (0) target = $region21
  $region20: #{tpu_custom_call.1} parent=0 // pred_region
    _
  $region21: #{tpu_custom_call.1} parent=0 // pred_fallthru
    _
  // Predicated region
  $region22: #{tpu_custom_call.1} parent=0 // pred_check
    _
  $region23: #{tpu_custom_call.1} parent=0 // pred_check_branch
    %25 = sbr.rel (0) target = $region25
  $region24: #{tpu_custom_call.1} parent=0 // pred_region
    _
  $region25: #{tpu_custom_call.1} parent=0 // pred_fallthru
    _
  // Predicated region
  $region26: #{tpu_custom_call.1} parent=0 // pred_check
    _
  $region27: #{tpu_custom_call.1} parent=0 // pred_check_branch
    %27 = sbr.rel (0) target = $region29
  $region28: #{tpu_custom_call.1} parent=0 // pred_region
    _
  $region29: #{tpu_custom_call.1} parent=0 // pred_fallthru
    _
  %v29 = vld [vmem:[%s0] sm:$0xff]
  %v30 = vld [vmem:[%s0 + $0x8] sm:$0xff]
  %v31 = vld [vmem:[%s0 + $0x10] sm:$0xff]
  %v32 = vld [vmem:[%s0 + $0x18] sm:$0xff]
  %v33 = vld [vmem:[%s0 + $0x20] sm:$0xff]
  %v34 = vld [vmem:[%s0 + $0x28] sm:$0xff]
  %v35 = vld [vmem:[%s0 + $0x30] sm:$0xff]
  %v36 = vld [vmem:[%s0 + $0x38] sm:$0xff]
  %v37 = vld [vmem:[%s0 + $0x40] sm:$0xff]
  %v38 = vld [vmem:[%s0 + $0x48] sm:$0xff]
  %v39 = vld [vmem:[%s0 + $0x50] sm:$0xff]
  %v40 = vld [vmem:[%s0 + $0x58] sm:$0xff]
  %v41 = vld [vmem:[%s0 + $0x60] sm:$0xff]
  %v42 = vld [vmem:[%s0 + $0x68] sm:$0xff]
  %v43 = vld [vmem:[%s0 + $0x70] sm:$0xff]
  %v44 = vld [vmem:[%s0 + $0x78] sm:$0xff]
  %v45 = vld [vmem:[%s0 + $0x80] sm:$0xff]
  %v46 = vld [vmem:[%s0 + $0x88] sm:$0xff]
  %v47 = vld [vmem:[%s0 + $0x90] sm:$0xff]
  %v48 = vld [vmem:[%s0 + $0x98] sm:$0xff]
  %v49 = vld [vmem:[%s0 + $0xa0] sm:$0xff]
  %v50 = vld [vmem:[%s0 + $0xa8] sm:$0xff]
  %v51 = vld [vmem:[%s0 + $0xb0] sm:$0xff]
  %v52 = vld [vmem:[%s0 + $0xb8] sm:$0xff]
  %v53 = vld [vmem:[%s0 + $0xc0] sm:$0xff]
  %v54 = vld [vmem:[%s0 + $0xc8] sm:$0xff]
  %v55 = vld [vmem:[%s0 + $0xd0] sm:$0xff]
  %v56 = vld [vmem:[%s0 + $0xd8] sm:$0xff]
  %v57 = vld [vmem:[%s0 + $0xe0] sm:$0xff]
  %v58 = vld [vmem:[%s0 + $0xe8] sm:$0xff]
  %v59 = vld [vmem:[%s0 + $0xf0] sm:$0xff]
  %v60 = vld [vmem:[%s0 + $0xf8] sm:$0xff]
  %v61 = vld [vmem:[%s0 + $0x100] sm:$0xff]
  %v62 = vld [vmem:[%s0 + $0x108] sm:$0xff]
  %v63 = vld [vmem:[%s0 + $0x110] sm:$0xff]
  %v64 = vld [vmem:[%s0 + $0x118] sm:$0xff]
  %v65 = vld [vmem:[%s0 + $0x120] sm:$0xff]
  %v66 = vld [vmem:[%s0 + $0x128] sm:$0xff]
  %v67 = vld [vmem:[%s0 + $0x130] sm:$0xff]
  %v68 = vld [vmem:[%s0 + $0x138] sm:$0xff]
  %v69 = vld [vmem:[%s0 + $0x140] sm:$0xff]
  %v70 = vpack.c.bf16 %v29, %v29
  %v71 = vpack.c.bf16 %v30, %v30
  %v72 = vpack.c.bf16 %v31, %v31
  %v73 = vpack.c.bf16 %v32, %v32
  %v74 = vpack.c.bf16 %v33, %v33
  %v75 = vpack.c.bf16 %v34, %v34
  %v76 = vpack.c.bf16 %v35, %v35
  %v77 = vpack.c.bf16 %v36, %v36
  %v78 = vpack.c.bf16 %v37, %v37
  %v79 = vpack.c.bf16 %v38, %v38
  %v80 = vpack.c.bf16 %v39, %v39
  %v81 = vpack.c.bf16 %v40, %v40
  %v82 = vpack.c.bf16 %v41, %v41
  %v83 = vpack.c.bf16 %v42, %v42
  %v84 = vpack.c.bf16 %v43, %v43
  %v85 = vpack.c.bf16 %v44, %v44
  %v86 = vpack.c.bf16 %v45, %v45
  %v87 = vpack.c.bf16 %v46, %v46
  %v88 = vpack.c.bf16 %v47, %v47
  %v89 = vpack.c.bf16 %v48, %v48
  %v90 = vpack.c.bf16 %v49, %v49
  %v91 = vpack.c.bf16 %v50, %v50
  %v92 = vpack.c.bf16 %v51, %v51
  %v93 = vpack.c.bf16 %v52, %v52
  %v94 = vpack.c.bf16 %v53, %v53
  %v95 = vpack.c.bf16 %v54, %v54
  %v96 = vpack.c.bf16 %v55, %v55
  %v97 = vpack.c.bf16 %v56, %v56
  %v98 = vpack.c.bf16 %v57, %v57
  %v99 = vpack.c.bf16 %v58, %v58
  %v100 = vpack.c.bf16 %v59, %v59
  %v101 = vpack.c.bf16 %v60, %v60
  %v102 = vpack.c.bf16 %v61, %v61
  %v103 = vpack.c.bf16 %v62, %v62
  %v104 = vpack.c.bf16 %v63, %v63
  %v105 = vpack.c.bf16 %v64, %v64
  %v106 = vpack.c.bf16 %v65, %v65
  %v107 = vpack.c.bf16 %v66, %v66
  %v108 = vpack.c.bf16 %v67, %v67
  %v109 = vpack.c.bf16 %v68, %v68
  %v110 = vpack.c.bf16 %v69, %v69
  %v111 = vld [vmem:[%s1] sm:$0xf]
  %v112 = vld [vmem:[%s1 + $0x4] sm:$0xf]
  %v113 = vld [vmem:[%s1 + $0x8] sm:$0xf]
  %v114 = vld [vmem:[%s1 + $0xc] sm:$0xf]
  %v115 = vld [vmem:[%s1 + $0x10] sm:$0xf]
  %v116 = vld [vmem:[%s1 + $0x14] sm:$0xf]
  %v117 = vld [vmem:[%s1 + $0x18] sm:$0xf]
  %v118 = vld [vmem:[%s1 + $0x1c] sm:$0xf]
  %v119 = vld [vmem:[%s1 + $0x20] sm:$0xf]
  %v120 = vld [vmem:[%s1 + $0x24] sm:$0xf]
  %v121 = vld [vmem:[%s1 + $0x28] sm:$0xf]
  %v122 = vld [vmem:[%s1 + $0x2c] sm:$0xf]
  %v123 = vld [vmem:[%s1 + $0x30] sm:$0xf]
  %v124 = vld [vmem:[%s1 + $0x34] sm:$0xf]
  %v125 = vld [vmem:[%s1 + $0x38] sm:$0xf]
  %v126 = vld [vmem:[%s1 + $0x3c] sm:$0xf]
  %v127 = vld [vmem:[%s1 + $0x40] sm:$0xf]
  %v128 = vld [vmem:[%s1 + $0x44] sm:$0xf]
  %v129 = vld [vmem:[%s1 + $0x48] sm:$0xf]
  %v130 = vld [vmem:[%s1 + $0x4c] sm:$0xf]
  %v131 = vld [vmem:[%s1 + $0x50] sm:$0xf]
  %v132 = vld [vmem:[%s1 + $0x54] sm:$0xf]
  %v133 = vld [vmem:[%s1 + $0x58] sm:$0xf]
  %v134 = vld [vmem:[%s1 + $0x5c] sm:$0xf]
  %v135 = vld [vmem:[%s1 + $0x60] sm:$0xf]
  %v136 = vld [vmem:[%s1 + $0x64] sm:$0xf]
  %v137 = vld [vmem:[%s1 + $0x68] sm:$0xf]
  %v138 = vld [vmem:[%s1 + $0x6c] sm:$0xf]
  %v139 = vld [vmem:[%s1 + $0x70] sm:$0xf]
  %v140 = vld [vmem:[%s1 + $0x74] sm:$0xf]
  %v141 = vld [vmem:[%s1 + $0x78] sm:$0xf]
  %v142 = vld [vmem:[%s1 + $0x7c] sm:$0xf]
  %v143 = vld [vmem:[%s1 + $0x80] sm:$0xf]
  %v144 = vld [vmem:[%s1 + $0x84] sm:$0xf]
  %v145 = vld [vmem:[%s1 + $0x88] sm:$0xf]
  %v146 = vld [vmem:[%s1 + $0x8c] sm:$0xf]
  %v147 = vld [vmem:[%s1 + $0x90] sm:$0xf]
  %v148 = vld [vmem:[%s1 + $0x94] sm:$0xf]
  %v149 = vld [vmem:[%s1 + $0x98] sm:$0xf]
  %v150 = vld [vmem:[%s1 + $0x9c] sm:$0xf]
  %v151 = vld [vmem:[%s1 + $0xa0] sm:$0xf]
  %v152 = vld [vmem:[%s1 + $0xa4] sm:$0xf]
  %v153 = vld [vmem:[%s1 + $0xa8] sm:$0xf]
  %v154 = vld [vmem:[%s1 + $0xac] sm:$0xf]
  %v155 = vld [vmem:[%s1 + $0xb0] sm:$0xf]
  %v156 = vld [vmem:[%s1 + $0xb4] sm:$0xf]
  %v157 = vld [vmem:[%s1 + $0xb8] sm:$0xf]
  %v158 = vld [vmem:[%s1 + $0xbc] sm:$0xf]
  %v159 = vld [vmem:[%s1 + $0xc0] sm:$0xf]
  %v160 = vld [vmem:[%s1 + $0xc4] sm:$0xf]
  %v161 = vld [vmem:[%s1 + $0xc8] sm:$0xf]
  %v162 = vld [vmem:[%s1 + $0xcc] sm:$0xf]
  %v163 = vld [vmem:[%s1 + $0xd0] sm:$0xf]
  %v164 = vld [vmem:[%s1 + $0xd4] sm:$0xf]
  %v165 = vld [vmem:[%s1 + $0xd8] sm:$0xf]
  %v166 = vld [vmem:[%s1 + $0xdc] sm:$0xf]
  %v167 = vld [vmem:[%s1 + $0xe0] sm:$0xf]
  %v168 = vld [vmem:[%s1 + $0xe4] sm:$0xf]
  %v169 = vld [vmem:[%s1 + $0xe8] sm:$0xf]
  %v170 = vld [vmem:[%s1 + $0xec] sm:$0xf]
  %v171 = vld [vmem:[%s1 + $0xf0] sm:$0xf]
  %v172 = vld [vmem:[%s1 + $0xf4] sm:$0xf]
  %v173 = vld [vmem:[%s1 + $0xf8] sm:$0xf]
  %v174 = vld [vmem:[%s1 + $0xfc] sm:$0xf]
  %v175 = vld [vmem:[%s1 + $0x100] sm:$0xf]
  %v176 = vld [vmem:[%s1 + $0x104] sm:$0xf]
  %v177 = vld [vmem:[%s1 + $0x108] sm:$0xf]
  %v178 = vld [vmem:[%s1 + $0x10c] sm:$0xf]
  %v179 = vld [vmem:[%s1 + $0x110] sm:$0xf]
  %v180 = vld [vmem:[%s1 + $0x114] sm:$0xf]
  %v181 = vld [vmem:[%s1 + $0x118] sm:$0xf]
  %v182 = vld [vmem:[%s1 + $0x11c] sm:$0xf]
  %v183 = vld [vmem:[%s1 + $0x120] sm:$0xf]
  %v184 = vld [vmem:[%s1 + $0x124] sm:$0xf]
  %v185 = vld [vmem:[%s1 + $0x128] sm:$0xf]
  %v186 = vld [vmem:[%s1 + $0x12c] sm:$0xf]
  %v187 = vld [vmem:[%s1 + $0x130] sm:$0xf]
  %v188 = vld [vmem:[%s1 + $0x134] sm:$0xf]
  %v189 = vld [vmem:[%s1 + $0x138] sm:$0xf]
  %v190 = vld [vmem:[%s1 + $0x13c] sm:$0xf]
  %v191 = vld [vmem:[%s1 + $0x140] sm:$0xf]
  %v192 = vld [vmem:[%s1 + $0x144] sm:$0xf]
  %v193 = vld [vmem:[%s1 + $0x148] sm:$0xf]
  %v194 = vld [vmem:[%s1 + $0x14c] sm:$0xf]
  %v195 = vld [vmem:[%s1 + $0x150] sm:$0xf]
  %v196 = vld [vmem:[%s1 + $0x154] sm:$0xf]
  %v197 = vld [vmem:[%s1 + $0x158] sm:$0xf]
  %v198 = vld [vmem:[%s1 + $0x15c] sm:$0xf]
  %v199 = vld [vmem:[%s1 + $0x160] sm:$0xf]
  %v200 = vld [vmem:[%s1 + $0x164] sm:$0xf]
  %v201 = vld [vmem:[%s1 + $0x168] sm:$0xf]
  %v202 = vld [vmem:[%s1 + $0x16c] sm:$0xf]
  %v203 = vld [vmem:[%s1 + $0x170] sm:$0xf]
  %v204 = vld [vmem:[%s1 + $0x174] sm:$0xf]
  %v205 = vld [vmem:[%s1 + $0x178] sm:$0xf]
  %v206 = vld [vmem:[%s1 + $0x17c] sm:$0xf]
  %v207 = vld [vmem:[%s1 + $0x180] sm:$0xf]
  %v208 = vld [vmem:[%s1 + $0x184] sm:$0xf]
  %v209 = vld [vmem:[%s1 + $0x188] sm:$0xf]
  %v210 = vld [vmem:[%s1 + $0x18c] sm:$0xf]
  %v211 = vld [vmem:[%s1 + $0x190] sm:$0xf]
  %v212 = vld [vmem:[%s1 + $0x194] sm:$0xf]
  %v213 = vld [vmem:[%s1 + $0x198] sm:$0xf]
  %v214 = vld [vmem:[%s1 + $0x19c] sm:$0xf]
  %v215 = vld [vmem:[%s1 + $0x1a0] sm:$0xf]
  %v216 = vld [vmem:[%s1 + $0x1a4] sm:$0xf]
  %v217 = vld [vmem:[%s1 + $0x1a8] sm:$0xf]
  %v218 = vld [vmem:[%s1 + $0x1ac] sm:$0xf]
  %v219 = vld [vmem:[%s1 + $0x1b0] sm:$0xf]
  %v220 = vld [vmem:[%s1 + $0x1b4] sm:$0xf]
  %v221 = vld [vmem:[%s1 + $0x1b8] sm:$0xf]
  %v222 = vld [vmem:[%s1 + $0x1bc] sm:$0xf]
  %v223 = vld [vmem:[%s1 + $0x1c0] sm:$0xf]
  %v224 = vld [vmem:[%s1 + $0x1c4] sm:$0xf]
  %v225 = vld [vmem:[%s1 + $0x1c8] sm:$0xf]
  %v226 = vld [vmem:[%s1 + $0x1cc] sm:$0xf]
  %v227 = vld [vmem:[%s1 + $0x1d0] sm:$0xf]
  %v228 = vld [vmem:[%s1 + $0x1d4] sm:$0xf]
  %v229 = vld [vmem:[%s1 + $0x1d8] sm:$0xf]
  %v230 = vld [vmem:[%s1 + $0x1dc] sm:$0xf]
  %v231 = vld [vmem:[%s1 + $0x1e0] sm:$0xf]
  %v232 = vld [vmem:[%s1 + $0x1e4] sm:$0xf]
  %v233 = vld [vmem:[%s1 + $0x1e8] sm:$0xf]
  %v234 = vld [vmem:[%s1 + $0x1ec] sm:$0xf]
  %v235 = vld [vmem:[%s1 + $0x1f0] sm:$0xf]
  %v236 = vld [vmem:[%s1 + $0x1f4] sm:$0xf]
  %v237 = vld [vmem:[%s1 + $0x1f8] sm:$0xf]
  %v238 = vld [vmem:[%s1 + $0x1fc] sm:$0xf]
  %v239 = vld [vmem:[%s1 + $0x200] sm:$0xf]
  %v240 = vld [vmem:[%s1 + $0x204] sm:$0xf]
  %v241 = vld [vmem:[%s1 + $0x208] sm:$0xf]
  %v242 = vld [vmem:[%s1 + $0x20c] sm:$0xf]
  %v243 = vld [vmem:[%s1 + $0x210] sm:$0xf]
  %v244 = vld [vmem:[%s1 + $0x214] sm:$0xf]
  %v245 = vld [vmem:[%s1 + $0x218] sm:$0xf]
  %v246 = vld [vmem:[%s1 + $0x21c] sm:$0xf]
  %v247 = vld [vmem:[%s1 + $0x220] sm:$0xf]
  %v248 = vld [vmem:[%s1 + $0x224] sm:$0xf]
  %v249 = vld [vmem:[%s1 + $0x228] sm:$0xf]
  %v250 = vld [vmem:[%s1 + $0x22c] sm:$0xf]
  %v251 = vld [vmem:[%s1 + $0x230] sm:$0xf]
  %v252 = vld [vmem:[%s1 + $0x234] sm:$0xf]
  %v253 = vld [vmem:[%s1 + $0x238] sm:$0xf]
  %v254 = vld [vmem:[%s1 + $0x23c] sm:$0xf]
  %v255 = vld [vmem:[%s1 + $0x240] sm:$0xf]
  %v256 = vld [vmem:[%s1 + $0x244] sm:$0xf]
  %v257 = vld [vmem:[%s1 + $0x248] sm:$0xf]
  %v258 = vld [vmem:[%s1 + $0x24c] sm:$0xf]
  %v259 = vld [vmem:[%s1 + $0x250] sm:$0xf]
  %v260 = vld [vmem:[%s1 + $0x254] sm:$0xf]
  %v261 = vld [vmem:[%s1 + $0x258] sm:$0xf]
  %v262 = vld [vmem:[%s1 + $0x25c] sm:$0xf]
  %v263 = vld [vmem:[%s1 + $0x260] sm:$0xf]
  %v264 = vld [vmem:[%s1 + $0x264] sm:$0xf]
  %v265 = vld [vmem:[%s1 + $0x268] sm:$0xf]
  %v266 = vld [vmem:[%s1 + $0x26c] sm:$0xf]
  %v267 = vld [vmem:[%s1 + $0x270] sm:$0xf]
  %v268 = vld [vmem:[%s1 + $0x274] sm:$0xf]
  %v269 = vld [vmem:[%s1 + $0x278] sm:$0xf]
  %v270 = vld [vmem:[%s1 + $0x27c] sm:$0xf]
  %v271 = vld [vmem:[%s1 + $0x280] sm:$0xf]
  %v272 = vld [vmem:[%s1 + $0x284] sm:$0xf]
  %v273 = vld [vmem:[%s1 + $0x288] sm:$0xf]
  %v274 = vld [vmem:[%s1 + $0x28c] sm:$0xf]
  %v275 = vld [vmem:[%s1 + $0x290] sm:$0xf]
  %v276 = vld [vmem:[%s1 + $0x294] sm:$0xf]
  %v277 = vld [vmem:[%s1 + $0x298] sm:$0xf]
  %v278 = vld [vmem:[%s1 + $0x29c] sm:$0xf]
  %v279 = vld [vmem:[%s1 + $0x2a0] sm:$0xf]
  %v280 = vld [vmem:[%s1 + $0x2a4] sm:$0xf]
  %v281 = vld [vmem:[%s1 + $0x2a8] sm:$0xf]
  %v282 = vld [vmem:[%s1 + $0x2ac] sm:$0xf]
  %v283 = vld [vmem:[%s1 + $0x2b0] sm:$0xf]
  %v284 = vld [vmem:[%s1 + $0x2b4] sm:$0xf]
  %v285 = vld [vmem:[%s1 + $0x2b8] sm:$0xf]
  %v286 = vld [vmem:[%s1 + $0x2bc] sm:$0xf]
  %v287 = vld [vmem:[%s1 + $0x2c0] sm:$0xf]
  %v288 = vld [vmem:[%s1 + $0x2c4] sm:$0xf]
  %v289 = vld [vmem:[%s1 + $0x2c8] sm:$0xf]
  %v290 = vld [vmem:[%s1 + $0x2cc] sm:$0xf]
  %v291 = vld [vmem:[%s1 + $0x2d0] sm:$0xf]
  %v292 = vld [vmem:[%s1 + $0x2d4] sm:$0xf]
  %v293 = vld [vmem:[%s1 + $0x2d8] sm:$0xf]
  %v294 = vld [vmem:[%s1 + $0x2dc] sm:$0xf]
  %v295 = vld [vmem:[%s1 + $0x2e0] sm:$0xf]
  %v296 = vld [vmem:[%s1 + $0x2e4] sm:$0xf]
  %v297 = vld [vmem:[%s1 + $0x2e8] sm:$0xf]
  %v298 = vld [vmem:[%s1 + $0x2ec] sm:$0xf]
  %v299 = vld [vmem:[%s1 + $0x2f0] sm:$0xf]
  %v300 = vld [vmem:[%s1 + $0x2f4] sm:$0xf]
  %v301 = vld [vmem:[%s1 + $0x2f8] sm:$0xf]
  %v302 = vld [vmem:[%s1 + $0x2fc] sm:$0xf]
  %v303 = vld [vmem:[%s1 + $0x300] sm:$0xf]
  %v304 = vld [vmem:[%s1 + $0x304] sm:$0xf]
  %v305 = vld [vmem:[%s1 + $0x308] sm:$0xf]
  %v306 = vld [vmem:[%s1 + $0x30c] sm:$0xf]
  %v307 = vld [vmem:[%s1 + $0x310] sm:$0xf]
  %v308 = vld [vmem:[%s1 + $0x314] sm:$0xf]
  %v309 = vld [vmem:[%s1 + $0x318] sm:$0xf]
  %v310 = vld [vmem:[%s1 + $0x31c] sm:$0xf]
  %v311 = vld [vmem:[%s1 + $0x320] sm:$0xf]
  %v312 = vld [vmem:[%s1 + $0x324] sm:$0xf]
  %v313 = vld [vmem:[%s1 + $0x328] sm:$0xf]
  %v314 = vld [vmem:[%s1 + $0x32c] sm:$0xf]
  %v315 = vld [vmem:[%s1 + $0x330] sm:$0xf]
  %v316 = vld [vmem:[%s1 + $0x334] sm:$0xf]
  %v317 = vld [vmem:[%s1 + $0x338] sm:$0xf]
  %v318 = vld [vmem:[%s1 + $0x33c] sm:$0xf]
  %v319 = vld [vmem:[%s1 + $0x340] sm:$0xf]
  %v320 = vld [vmem:[%s1 + $0x344] sm:$0xf]
  %v321 = vld [vmem:[%s1 + $0x348] sm:$0xf]
  %v322 = vld [vmem:[%s1 + $0x34c] sm:$0xf]
  %v323 = vld [vmem:[%s1 + $0x350] sm:$0xf]
  %v324 = vld [vmem:[%s1 + $0x354] sm:$0xf]
  %v325 = vld [vmem:[%s1 + $0x358] sm:$0xf]
  %v326 = vld [vmem:[%s1 + $0x35c] sm:$0xf]
  %v327 = vld [vmem:[%s1 + $0x360] sm:$0xf]
  %v328 = vld [vmem:[%s1 + $0x364] sm:$0xf]
  %v329 = vld [vmem:[%s1 + $0x368] sm:$0xf]
  %v330 = vld [vmem:[%s1 + $0x36c] sm:$0xf]
  %v331 = vld [vmem:[%s1 + $0x370] sm:$0xf]
  %v332 = vld [vmem:[%s1 + $0x374] sm:$0xf]
  %v333 = vld [vmem:[%s1 + $0x378] sm:$0xf]
  %v334 = vld [vmem:[%s1 + $0x37c] sm:$0xf]
  %v335 = vld [vmem:[%s1 + $0x380] sm:$0xf]
  %v336 = vld [vmem:[%s1 + $0x384] sm:$0xf]
  %v337 = vld [vmem:[%s1 + $0x388] sm:$0xf]
  %v338 = vld [vmem:[%s1 + $0x38c] sm:$0xf]
  %v339 = vld [vmem:[%s1 + $0x390] sm:$0xf]
  %v340 = vld [vmem:[%s1 + $0x394] sm:$0xf]
  %v341 = vld [vmem:[%s1 + $0x398] sm:$0xf]
  %v342 = vld [vmem:[%s1 + $0x39c] sm:$0xf]
  %v343 = vld [vmem:[%s1 + $0x3a0] sm:$0xf]
  %v344 = vld [vmem:[%s1 + $0x3a4] sm:$0xf]
  %v345 = vld [vmem:[%s1 + $0x3a8] sm:$0xf]
  %v346 = vld [vmem:[%s1 + $0x3ac] sm:$0xf]
  %v347 = vld [vmem:[%s1 + $0x3b0] sm:$0xf]
  %v348 = vld [vmem:[%s1 + $0x3b4] sm:$0xf]
  %v349 = vld [vmem:[%s1 + $0x3b8] sm:$0xf]
  %v350 = vld [vmem:[%s1 + $0x3bc] sm:$0xf]
  %v351 = vld [vmem:[%s1 + $0x3c0] sm:$0xf]
  %v352 = vld [vmem:[%s1 + $0x3c4] sm:$0xf]
  %v353 = vld [vmem:[%s1 + $0x3c8] sm:$0xf]
  %v354 = vld [vmem:[%s1 + $0x3cc] sm:$0xf]
  %v355 = vld [vmem:[%s1 + $0x3d0] sm:$0xf]
  %v356 = vld [vmem:[%s1 + $0x3d4] sm:$0xf]
  %v357 = vld [vmem:[%s1 + $0x3d8] sm:$0xf]
  %v358 = vld [vmem:[%s1 + $0x3dc] sm:$0xf]
  %v359 = vld [vmem:[%s1 + $0x3e0] sm:$0xf]
  %v360 = vld [vmem:[%s1 + $0x3e4] sm:$0xf]
  %v361 = vld [vmem:[%s1 + $0x3e8] sm:$0xf]
  %v362 = vld [vmem:[%s1 + $0x3ec] sm:$0xf]
  %v363 = vld [vmem:[%s1 + $0x3f0] sm:$0xf]
  %v364 = vld [vmem:[%s1 + $0x3f4] sm:$0xf]
  %v365 = vld [vmem:[%s1 + $0x3f8] sm:$0xf]
  %v366 = vld [vmem:[%s1 + $0x3fc] sm:$0xf]
  %v367 = vld [vmem:[%s1 + $0x400] sm:$0xf]
  %v368 = vld [vmem:[%s1 + $0x404] sm:$0xf]
  %v369 = vld [vmem:[%s1 + $0x408] sm:$0xf]
  %v370 = vld [vmem:[%s1 + $0x40c] sm:$0xf]
  %v371 = vld [vmem:[%s1 + $0x410] sm:$0xf]
  %v372 = vld [vmem:[%s1 + $0x414] sm:$0xf]
  %v373 = vld [vmem:[%s1 + $0x418] sm:$0xf]
  %v374 = vld [vmem:[%s1 + $0x41c] sm:$0xf]
  %v375 = vld [vmem:[%s1 + $0x420] sm:$0xf]
  %v376 = vld [vmem:[%s1 + $0x424] sm:$0xf]
  %v377 = vld [vmem:[%s1 + $0x428] sm:$0xf]
  %v378 = vld [vmem:[%s1 + $0x42c] sm:$0xf]
  %v379 = vld [vmem:[%s1 + $0x430] sm:$0xf]
  %v380 = vld [vmem:[%s1 + $0x434] sm:$0xf]
  %v381 = vld [vmem:[%s1 + $0x438] sm:$0xf]
  %v382 = vld [vmem:[%s1 + $0x43c] sm:$0xf]
  %v383 = vld [vmem:[%s1 + $0x440] sm:$0xf]
  %v384 = vld [vmem:[%s1 + $0x444] sm:$0xf]
  %v385 = vld [vmem:[%s1 + $0x448] sm:$0xf]
  %v386 = vld [vmem:[%s1 + $0x44c] sm:$0xf]
  %v387 = vld [vmem:[%s1 + $0x450] sm:$0xf]
  %v388 = vld [vmem:[%s1 + $0x454] sm:$0xf]
  %v389 = vld [vmem:[%s1 + $0x458] sm:$0xf]
  %v390 = vld [vmem:[%s1 + $0x45c] sm:$0xf]
  %v391 = vld [vmem:[%s1 + $0x460] sm:$0xf]
  %v392 = vld [vmem:[%s1 + $0x464] sm:$0xf]
  %v393 = vld [vmem:[%s1 + $0x468] sm:$0xf]
  %v394 = vld [vmem:[%s1 + $0x46c] sm:$0xf]
  %v395 = vld [vmem:[%s1 + $0x470] sm:$0xf]
  %v396 = vld [vmem:[%s1 + $0x474] sm:$0xf]
  %v397 = vld [vmem:[%s1 + $0x478] sm:$0xf]
  %v398 = vld [vmem:[%s1 + $0x47c] sm:$0xf]
  %v399 = vld [vmem:[%s1 + $0x480] sm:$0xf]
  %v400 = vld [vmem:[%s1 + $0x484] sm:$0xf]
  %v401 = vld [vmem:[%s1 + $0x488] sm:$0xf]
  %v402 = vld [vmem:[%s1 + $0x48c] sm:$0xf]
  %v403 = vld [vmem:[%s1 + $0x490] sm:$0xf]
  %v404 = vld [vmem:[%s1 + $0x494] sm:$0xf]
  %v405 = vld [vmem:[%s1 + $0x498] sm:$0xf]
  %v406 = vld [vmem:[%s1 + $0x49c] sm:$0xf]
  %v407 = vld [vmem:[%s1 + $0x4a0] sm:$0xf]
  %v408 = vld [vmem:[%s1 + $0x4a4] sm:$0xf]
  %v409 = vld [vmem:[%s1 + $0x4a8] sm:$0xf]
  %v410 = vld [vmem:[%s1 + $0x4ac] sm:$0xf]
  %v411 = vld [vmem:[%s1 + $0x4b0] sm:$0xf]
  %v412 = vld [vmem:[%s1 + $0x4b4] sm:$0xf]
  %v413 = vld [vmem:[%s1 + $0x4b8] sm:$0xf]
  %v414 = vld [vmem:[%s1 + $0x4bc] sm:$0xf]
  %v415 = vld [vmem:[%s1 + $0x4c0] sm:$0xf]
  %v416 = vld [vmem:[%s1 + $0x4c4] sm:$0xf]
  %v417 = vld [vmem:[%s1 + $0x4c8] sm:$0xf]
  %v418 = vld [vmem:[%s1 + $0x4cc] sm:$0xf]
  %v419 = vld [vmem:[%s1 + $0x4d0] sm:$0xf]
  %v420 = vld [vmem:[%s1 + $0x4d4] sm:$0xf]
  %v421 = vld [vmem:[%s1 + $0x4d8] sm:$0xf]
  %v422 = vld [vmem:[%s1 + $0x4dc] sm:$0xf]
  %v423 = vld [vmem:[%s1 + $0x4e0] sm:$0xf]
  %v424 = vld [vmem:[%s1 + $0x4e4] sm:$0xf]
  %v425 = vld [vmem:[%s1 + $0x4e8] sm:$0xf]
  %v426 = vld [vmem:[%s1 + $0x4ec] sm:$0xf]
  %v427 = vld [vmem:[%s1 + $0x4f0] sm:$0xf]
  %v428 = vld [vmem:[%s1 + $0x4f4] sm:$0xf]
  %v429 = vld [vmem:[%s1 + $0x4f8] sm:$0xf]
  %v430 = vld [vmem:[%s1 + $0x4fc] sm:$0xf]
  %v431 = vld [vmem:[%s1 + $0x500] sm:$0xf]
  %v432 = vld [vmem:[%s1 + $0x504] sm:$0xf]
  %v433 = vld [vmem:[%s1 + $0x508] sm:$0xf]
  %v434 = vld [vmem:[%s1 + $0x50c] sm:$0xf]
  %v435 = vld [vmem:[%s1 + $0x510] sm:$0xf]
  %v436 = vld [vmem:[%s1 + $0x514] sm:$0xf]
  %v437 = vld [vmem:[%s1 + $0x518] sm:$0xf]
  %v438 = vld [vmem:[%s1 + $0x51c] sm:$0xf]
  %v439 = vld [vmem:[%s1 + $0x520] sm:$0xf]
  %v440 = vld [vmem:[%s1 + $0x524] sm:$0xf]
  %v441 = vld [vmem:[%s1 + $0x528] sm:$0xf]
  %v442 = vld [vmem:[%s1 + $0x52c] sm:$0xf]
  %v443 = vld [vmem:[%s1 + $0x530] sm:$0xf]
  %v444 = vld [vmem:[%s1 + $0x534] sm:$0xf]
  %v445 = vld [vmem:[%s1 + $0x538] sm:$0xf]
  %v446 = vld [vmem:[%s1 + $0x53c] sm:$0xf]
  %v447 = vld [vmem:[%s1 + $0x540] sm:$0xf]
  %v448 = vld [vmem:[%s1 + $0x544] sm:$0xf]
  %v449 = vld [vmem:[%s1 + $0x548] sm:$0xf]
  %v450 = vld [vmem:[%s1 + $0x54c] sm:$0xf]
  %v451 = vld [vmem:[%s1 + $0x550] sm:$0xf]
  %v452 = vld [vmem:[%s1 + $0x554] sm:$0xf]
  %v453 = vld [vmem:[%s1 + $0x558] sm:$0xf]
  %v454 = vld [vmem:[%s1 + $0x55c] sm:$0xf]
  %v455 = vld [vmem:[%s1 + $0x560] sm:$0xf]
  %v456 = vld [vmem:[%s1 + $0x564] sm:$0xf]
  %v457 = vld [vmem:[%s1 + $0x568] sm:$0xf]
  %v458 = vld [vmem:[%s1 + $0x56c] sm:$0xf]
  %v459 = vld [vmem:[%s1 + $0x570] sm:$0xf]
  %v460 = vld [vmem:[%s1 + $0x574] sm:$0xf]
  %v461 = vld [vmem:[%s1 + $0x578] sm:$0xf]
  %v462 = vld [vmem:[%s1 + $0x57c] sm:$0xf]
  %v463 = vld [vmem:[%s1 + $0x580] sm:$0xf]
  %v464 = vld [vmem:[%s1 + $0x584] sm:$0xf]
  %v465 = vld [vmem:[%s1 + $0x588] sm:$0xf]
  %v466 = vld [vmem:[%s1 + $0x58c] sm:$0xf]
  %v467 = vld [vmem:[%s1 + $0x590] sm:$0xf]
  %v468 = vld [vmem:[%s1 + $0x594] sm:$0xf]
  %v469 = vld [vmem:[%s1 + $0x598] sm:$0xf]
  %v470 = vld [vmem:[%s1 + $0x59c] sm:$0xf]
  %v471 = vld [vmem:[%s1 + $0x5a0] sm:$0xf]
  %v472 = vld [vmem:[%s1 + $0x5a4] sm:$0xf]
  %v473 = vld [vmem:[%s1 + $0x5a8] sm:$0xf]
  %v474 = vld [vmem:[%s1 + $0x5ac] sm:$0xf]
  %v475 = vld [vmem:[%s1 + $0x5b0] sm:$0xf]
  %v476 = vld [vmem:[%s1 + $0x5b4] sm:$0xf]
  %v477 = vld [vmem:[%s1 + $0x5b8] sm:$0xf]
  %v478 = vld [vmem:[%s1 + $0x5bc] sm:$0xf]
  %v479 = vld [vmem:[%s1 + $0x5c0] sm:$0xf]
  %v480 = vld [vmem:[%s1 + $0x5c4] sm:$0xf]
  %v481 = vld [vmem:[%s1 + $0x5c8] sm:$0xf]
  %v482 = vld [vmem:[%s1 + $0x5cc] sm:$0xf]
  %v483 = vld [vmem:[%s1 + $0x5d0] sm:$0xf]
  %v484 = vld [vmem:[%s1 + $0x5d4] sm:$0xf]
  %v485 = vld [vmem:[%s1 + $0x5d8] sm:$0xf]
  %v486 = vld [vmem:[%s1 + $0x5dc] sm:$0xf]
  %v487 = vld [vmem:[%s1 + $0x5e0] sm:$0xf]
  %v488 = vld [vmem:[%s1 + $0x5e4] sm:$0xf]
  %v489 = vld [vmem:[%s1 + $0x5e8] sm:$0xf]
  %v490 = vld [vmem:[%s1 + $0x5ec] sm:$0xf]
  %v491 = vld [vmem:[%s1 + $0x5f0] sm:$0xf]
  %v492 = vld [vmem:[%s1 + $0x5f4] sm:$0xf]
  %v493 = vld [vmem:[%s1 + $0x5f8] sm:$0xf]
  %v494 = vld [vmem:[%s1 + $0x5fc] sm:$0xf]
  %v495 = vld [vmem:[%s1 + $0x600] sm:$0xf]
  %v496 = vld [vmem:[%s1 + $0x604] sm:$0xf]
  %v497 = vld [vmem:[%s1 + $0x608] sm:$0xf]
  %v498 = vld [vmem:[%s1 + $0x60c] sm:$0xf]
  %v499 = vld [vmem:[%s1 + $0x610] sm:$0xf]
  %v500 = vld [vmem:[%s1 + $0x614] sm:$0xf]
  %v501 = vld [vmem:[%s1 + $0x618] sm:$0xf]
  %v502 = vld [vmem:[%s1 + $0x61c] sm:$0xf]
  %v503 = vld [vmem:[%s1 + $0x620] sm:$0xf]
  %v504 = vld [vmem:[%s1 + $0x624] sm:$0xf]
  %v505 = vld [vmem:[%s1 + $0x628] sm:$0xf]
  %v506 = vld [vmem:[%s1 + $0x62c] sm:$0xf]
  %v507 = vld [vmem:[%s1 + $0x630] sm:$0xf]
  %v508 = vld [vmem:[%s1 + $0x634] sm:$0xf]
  %v509 = vld [vmem:[%s1 + $0x638] sm:$0xf]
  %v510 = vld [vmem:[%s1 + $0x63c] sm:$0xf]
  %v511 = vld [vmem:[%s1 + $0x640] sm:$0xf]
  %v512 = vld [vmem:[%s1 + $0x644] sm:$0xf]
  %v513 = vld [vmem:[%s1 + $0x648] sm:$0xf]
  %v514 = vld [vmem:[%s1 + $0x64c] sm:$0xf]
  %v515 = vld [vmem:[%s1 + $0x650] sm:$0xf]
  %v516 = vld [vmem:[%s1 + $0x654] sm:$0xf]
  %v517 = vld [vmem:[%s1 + $0x658] sm:$0xf]
  %v518 = vld [vmem:[%s1 + $0x65c] sm:$0xf]
  %v519 = vld [vmem:[%s1 + $0x660] sm:$0xf]
  %v520 = vld [vmem:[%s1 + $0x664] sm:$0xf]
  %v521 = vld [vmem:[%s1 + $0x668] sm:$0xf]
  %v522 = vld [vmem:[%s1 + $0x66c] sm:$0xf]
  %v523 = vld [vmem:[%s1 + $0x670] sm:$0xf]
  %v524 = vld [vmem:[%s1 + $0x674] sm:$0xf]
  %v525 = vld [vmem:[%s1 + $0x678] sm:$0xf]
  %v526 = vld [vmem:[%s1 + $0x67c] sm:$0xf]
  %v527 = vld [vmem:[%s1 + $0x680] sm:$0xf]
  %v528 = vld [vmem:[%s1 + $0x684] sm:$0xf]
  %v529 = vld [vmem:[%s1 + $0x688] sm:$0xf]
  %v530 = vld [vmem:[%s1 + $0x68c] sm:$0xf]
  %v531 = vld [vmem:[%s1 + $0x690] sm:$0xf]
  %v532 = vld [vmem:[%s1 + $0x694] sm:$0xf]
  %v533 = vld [vmem:[%s1 + $0x698] sm:$0xf]
  %v534 = vld [vmem:[%s1 + $0x69c] sm:$0xf]
  %v535 = vld [vmem:[%s1 + $0x6a0] sm:$0xf]
  %v536 = vld [vmem:[%s1 + $0x6a4] sm:$0xf]
  %v537 = vld [vmem:[%s1 + $0x6a8] sm:$0xf]
  %v538 = vld [vmem:[%s1 + $0x6ac] sm:$0xf]
  %v539 = vld [vmem:[%s1 + $0x6b0] sm:$0xf]
  %v540 = vld [vmem:[%s1 + $0x6b4] sm:$0xf]
  %v541 = vld [vmem:[%s1 + $0x6b8] sm:$0xf]
  %v542 = vld [vmem:[%s1 + $0x6bc] sm:$0xf]
  %v543 = vld [vmem:[%s1 + $0x6c0] sm:$0xf]
  %v544 = vld [vmem:[%s1 + $0x6c4] sm:$0xf]
  %v545 = vld [vmem:[%s1 + $0x6c8] sm:$0xf]
  %v546 = vld [vmem:[%s1 + $0x6cc] sm:$0xf]
  %v547 = vld [vmem:[%s1 + $0x6d0] sm:$0xf]
  %v548 = vld [vmem:[%s1 + $0x6d4] sm:$0xf]
  %v549 = vld [vmem:[%s1 + $0x6d8] sm:$0xf]
  %v550 = vld [vmem:[%s1 + $0x6dc] sm:$0xf]
  %v551 = vld [vmem:[%s1 + $0x6e0] sm:$0xf]
  %v552 = vld [vmem:[%s1 + $0x6e4] sm:$0xf]
  %v553 = vld [vmem:[%s1 + $0x6e8] sm:$0xf]
  %v554 = vld [vmem:[%s1 + $0x6ec] sm:$0xf]
  %v555 = vld [vmem:[%s1 + $0x6f0] sm:$0xf]
  %v556 = vld [vmem:[%s1 + $0x6f4] sm:$0xf]
  %v557 = vld [vmem:[%s1 + $0x6f8] sm:$0xf]
  %v558 = vld [vmem:[%s1 + $0x6fc] sm:$0xf]
  %v559 = vld [vmem:[%s1 + $0x700] sm:$0xf]
  %v560 = vld [vmem:[%s1 + $0x704] sm:$0xf]
  %v561 = vld [vmem:[%s1 + $0x708] sm:$0xf]
  %v562 = vld [vmem:[%s1 + $0x70c] sm:$0xf]
  %v563 = vld [vmem:[%s1 + $0x710] sm:$0xf]
  %v564 = vld [vmem:[%s1 + $0x714] sm:$0xf]
  %v565 = vld [vmem:[%s1 + $0x718] sm:$0xf]
  %v566 = vld [vmem:[%s1 + $0x71c] sm:$0xf]
  %v567 = vld [vmem:[%s1 + $0x720] sm:$0xf]
  %v568 = vld [vmem:[%s1 + $0x724] sm:$0xf]
  %v569 = vld [vmem:[%s1 + $0x728] sm:$0xf]
  %v570 = vld [vmem:[%s1 + $0x72c] sm:$0xf]
  %v571 = vld [vmem:[%s1 + $0x730] sm:$0xf]
  %v572 = vld [vmem:[%s1 + $0x734] sm:$0xf]
  %v573 = vld [vmem:[%s1 + $0x738] sm:$0xf]
  %v574 = vld [vmem:[%s1 + $0x73c] sm:$0xf]
  %v575 = vld [vmem:[%s1 + $0x740] sm:$0xf]
  %v576 = vld [vmem:[%s1 + $0x744] sm:$0xf]
  %v577 = vld [vmem:[%s1 + $0x748] sm:$0xf]
  %v578 = vld [vmem:[%s1 + $0x74c] sm:$0xf]
  %v579 = vld [vmem:[%s1 + $0x750] sm:$0xf]
  %v580 = vld [vmem:[%s1 + $0x754] sm:$0xf]
  %v581 = vld [vmem:[%s1 + $0x758] sm:$0xf]
  %v582 = vld [vmem:[%s1 + $0x75c] sm:$0xf]
  %v583 = vld [vmem:[%s1 + $0x760] sm:$0xf]
  %v584 = vld [vmem:[%s1 + $0x764] sm:$0xf]
  %v585 = vld [vmem:[%s1 + $0x768] sm:$0xf]
  %v586 = vld [vmem:[%s1 + $0x76c] sm:$0xf]
  %v587 = vld [vmem:[%s1 + $0x770] sm:$0xf]
  %v588 = vld [vmem:[%s1 + $0x774] sm:$0xf]
  %v589 = vld [vmem:[%s1 + $0x778] sm:$0xf]
  %v590 = vld [vmem:[%s1 + $0x77c] sm:$0xf]
  %v591 = vld [vmem:[%s1 + $0x780] sm:$0xf]
  %v592 = vld [vmem:[%s1 + $0x784] sm:$0xf]
  %v593 = vld [vmem:[%s1 + $0x788] sm:$0xf]
  %v594 = vld [vmem:[%s1 + $0x78c] sm:$0xf]
  %v595 = vld [vmem:[%s1 + $0x790] sm:$0xf]
  %v596 = vld [vmem:[%s1 + $0x794] sm:$0xf]
  %v597 = vld [vmem:[%s1 + $0x798] sm:$0xf]
  %v598 = vld [vmem:[%s1 + $0x79c] sm:$0xf]
  %v599 = vld [vmem:[%s1 + $0x7a0] sm:$0xf]
  %v600 = vld [vmem:[%s1 + $0x7a4] sm:$0xf]
  %v601 = vld [vmem:[%s1 + $0x7a8] sm:$0xf]
  %v602 = vld [vmem:[%s1 + $0x7ac] sm:$0xf]
  %v603 = vld [vmem:[%s1 + $0x7b0] sm:$0xf]
  %v604 = vld [vmem:[%s1 + $0x7b4] sm:$0xf]
  %v605 = vld [vmem:[%s1 + $0x7b8] sm:$0xf]
  %v606 = vld [vmem:[%s1 + $0x7bc] sm:$0xf]
  %v607 = vld [vmem:[%s1 + $0x7c0] sm:$0xf]
  %v608 = vld [vmem:[%s1 + $0x7c4] sm:$0xf]
  %v609 = vld [vmem:[%s1 + $0x7c8] sm:$0xf]
  %v610 = vld [vmem:[%s1 + $0x7cc] sm:$0xf]
  %v611 = vld [vmem:[%s1 + $0x7d0] sm:$0xf]
  %v612 = vld [vmem:[%s1 + $0x7d4] sm:$0xf]
  %v613 = vld [vmem:[%s1 + $0x7d8] sm:$0xf]
  %v614 = vld [vmem:[%s1 + $0x7dc] sm:$0xf]
  %v615 = vld [vmem:[%s1 + $0x7e0] sm:$0xf]
  %v616 = vld [vmem:[%s1 + $0x7e4] sm:$0xf]
  %v617 = vld [vmem:[%s1 + $0x7e8] sm:$0xf]
  %v618 = vld [vmem:[%s1 + $0x7ec] sm:$0xf]
  %v619 = vld [vmem:[%s1 + $0x7f0] sm:$0xf]
  %v620 = vld [vmem:[%s1 + $0x7f4] sm:$0xf]
  %v621 = vld [vmem:[%s1 + $0x7f8] sm:$0xf]
  %v622 = vld [vmem:[%s1 + $0x7fc] sm:$0xf]
  %v623 = vld [vmem:[%s1 + $0x800] sm:$0xf]
  %v624 = vld [vmem:[%s1 + $0x804] sm:$0xf]
  %v625 = vld [vmem:[%s1 + $0x808] sm:$0xf]
  %v626 = vld [vmem:[%s1 + $0x80c] sm:$0xf]
  %v627 = vld [vmem:[%s1 + $0x810] sm:$0xf]
  %v628 = vld [vmem:[%s1 + $0x814] sm:$0xf]
  %v629 = vld [vmem:[%s1 + $0x818] sm:$0xf]
  %v630 = vld [vmem:[%s1 + $0x81c] sm:$0xf]
  %v631 = vld [vmem:[%s1 + $0x820] sm:$0xf]
  %v632 = vld [vmem:[%s1 + $0x824] sm:$0xf]
  %v633 = vld [vmem:[%s1 + $0x828] sm:$0xf]
  %v634 = vld [vmem:[%s1 + $0x82c] sm:$0xf]
  %v635 = vld [vmem:[%s1 + $0x830] sm:$0xf]
  %v636 = vld [vmem:[%s1 + $0x834] sm:$0xf]
  %v637 = vld [vmem:[%s1 + $0x838] sm:$0xf]
  %v638 = vld [vmem:[%s1 + $0x83c] sm:$0xf]
  %v639 = vld [vmem:[%s1 + $0x840] sm:$0xf]
  %v640 = vld [vmem:[%s1 + $0x844] sm:$0xf]
  %v641 = vld [vmem:[%s1 + $0x848] sm:$0xf]
  %v642 = vld [vmem:[%s1 + $0x84c] sm:$0xf]
  %v643 = vld [vmem:[%s1 + $0x850] sm:$0xf]
  %v644 = vld [vmem:[%s1 + $0x854] sm:$0xf]
  %v645 = vld [vmem:[%s1 + $0x858] sm:$0xf]
  %v646 = vld [vmem:[%s1 + $0x85c] sm:$0xf]
  %v647 = vld [vmem:[%s1 + $0x860] sm:$0xf]
  %v648 = vld [vmem:[%s1 + $0x864] sm:$0xf]
  %v649 = vld [vmem:[%s1 + $0x868] sm:$0xf]
  %v650 = vld [vmem:[%s1 + $0x86c] sm:$0xf]
  %v651 = vld [vmem:[%s1 + $0x870] sm:$0xf]
  %v652 = vld [vmem:[%s1 + $0x874] sm:$0xf]
  %v653 = vld [vmem:[%s1 + $0x878] sm:$0xf]
  %v654 = vld [vmem:[%s1 + $0x87c] sm:$0xf]
  %v655 = vld [vmem:[%s1 + $0x880] sm:$0xf]
  %v656 = vld [vmem:[%s1 + $0x884] sm:$0xf]
  %v657 = vld [vmem:[%s1 + $0x888] sm:$0xf]
  %v658 = vld [vmem:[%s1 + $0x88c] sm:$0xf]
  %v659 = vld [vmem:[%s1 + $0x890] sm:$0xf]
  %v660 = vld [vmem:[%s1 + $0x894] sm:$0xf]
  %v661 = vld [vmem:[%s1 + $0x898] sm:$0xf]
  %v662 = vld [vmem:[%s1 + $0x89c] sm:$0xf]
  %v663 = vld [vmem:[%s1 + $0x8a0] sm:$0xf]
  %v664 = vld [vmem:[%s1 + $0x8a4] sm:$0xf]
  %v665 = vld [vmem:[%s1 + $0x8a8] sm:$0xf]
  %v666 = vld [vmem:[%s1 + $0x8ac] sm:$0xf]
  %v667 = vld [vmem:[%s1 + $0x8b0] sm:$0xf]
  %v668 = vld [vmem:[%s1 + $0x8b4] sm:$0xf]
  %v669 = vld [vmem:[%s1 + $0x8b8] sm:$0xf]
  %v670 = vld [vmem:[%s1 + $0x8bc] sm:$0xf]
  %v671 = vld [vmem:[%s1 + $0x8c0] sm:$0xf]
  %v672 = vld [vmem:[%s1 + $0x8c4] sm:$0xf]
  %v673 = vld [vmem:[%s1 + $0x8c8] sm:$0xf]
  %v674 = vld [vmem:[%s1 + $0x8cc] sm:$0xf]
  %v675 = vld [vmem:[%s1 + $0x8d0] sm:$0xf]
  %v676 = vld [vmem:[%s1 + $0x8d4] sm:$0xf]
  %v677 = vld [vmem:[%s1 + $0x8d8] sm:$0xf]
  %v678 = vld [vmem:[%s1 + $0x8dc] sm:$0xf]
  %v679 = vld [vmem:[%s1 + $0x8e0] sm:$0xf]
  %v680 = vld [vmem:[%s1 + $0x8e4] sm:$0xf]
  %v681 = vld [vmem:[%s1 + $0x8e8] sm:$0xf]
  %v682 = vld [vmem:[%s1 + $0x8ec] sm:$0xf]
  %v683 = vld [vmem:[%s1 + $0x8f0] sm:$0xf]
  %v684 = vld [vmem:[%s1 + $0x8f4] sm:$0xf]
  %v685 = vld [vmem:[%s1 + $0x8f8] sm:$0xf]
  %v686 = vld [vmem:[%s1 + $0x8fc] sm:$0xf]
  %v687 = vld [vmem:[%s1 + $0x900] sm:$0xf]
  %v688 = vld [vmem:[%s1 + $0x904] sm:$0xf]
  %v689 = vld [vmem:[%s1 + $0x908] sm:$0xf]
  %v690 = vld [vmem:[%s1 + $0x90c] sm:$0xf]
  %v691 = vld [vmem:[%s1 + $0x910] sm:$0xf]
  %v692 = vld [vmem:[%s1 + $0x914] sm:$0xf]
  %v693 = vld [vmem:[%s1 + $0x918] sm:$0xf]
  %v694 = vld [vmem:[%s1 + $0x91c] sm:$0xf]
  %v695 = vld [vmem:[%s1 + $0x920] sm:$0xf]
  %v696 = vld [vmem:[%s1 + $0x924] sm:$0xf]
  %v697 = vld [vmem:[%s1 + $0x928] sm:$0xf]
  %v698 = vld [vmem:[%s1 + $0x92c] sm:$0xf]
  %v699 = vld [vmem:[%s1 + $0x930] sm:$0xf]
  %v700 = vld [vmem:[%s1 + $0x934] sm:$0xf]
  %v701 = vld [vmem:[%s1 + $0x938] sm:$0xf]
  %v702 = vld [vmem:[%s1 + $0x93c] sm:$0xf]
  %v703 = vld [vmem:[%s1 + $0x940] sm:$0xf]
  %v704 = vld [vmem:[%s1 + $0x944] sm:$0xf]
  %v705 = vld [vmem:[%s1 + $0x948] sm:$0xf]
  %v706 = vld [vmem:[%s1 + $0x94c] sm:$0xf]
  %v707 = vld [vmem:[%s1 + $0x950] sm:$0xf]
  %v708 = vld [vmem:[%s1 + $0x954] sm:$0xf]
  %v709 = vld [vmem:[%s1 + $0x958] sm:$0xf]
  %v710 = vld [vmem:[%s1 + $0x95c] sm:$0xf]
  %v711 = vld [vmem:[%s1 + $0x960] sm:$0xf]
  %v712 = vld [vmem:[%s1 + $0x964] sm:$0xf]
  %v713 = vld [vmem:[%s1 + $0x968] sm:$0xf]
  %v714 = vld [vmem:[%s1 + $0x96c] sm:$0xf]
  %v715 = vld [vmem:[%s1 + $0x970] sm:$0xf]
  %v716 = vld [vmem:[%s1 + $0x974] sm:$0xf]
  %v717 = vld [vmem:[%s1 + $0x978] sm:$0xf]
  %v718 = vld [vmem:[%s1 + $0x97c] sm:$0xf]
  %v719 = vld [vmem:[%s1 + $0x980] sm:$0xf]
  %v720 = vld [vmem:[%s1 + $0x984] sm:$0xf]
  %v721 = vld [vmem:[%s1 + $0x988] sm:$0xf]
  %v722 = vld [vmem:[%s1 + $0x98c] sm:$0xf]
  %v723 = vld [vmem:[%s1 + $0x990] sm:$0xf]
  %v724 = vld [vmem:[%s1 + $0x994] sm:$0xf]
  %v725 = vld [vmem:[%s1 + $0x998] sm:$0xf]
  %v726 = vld [vmem:[%s1 + $0x99c] sm:$0xf]
  %v727 = vld [vmem:[%s1 + $0x9a0] sm:$0xf]
  %v728 = vld [vmem:[%s1 + $0x9a4] sm:$0xf]
  %v729 = vld [vmem:[%s1 + $0x9a8] sm:$0xf]
  %v730 = vld [vmem:[%s1 + $0x9ac] sm:$0xf]
  %v731 = vld [vmem:[%s1 + $0x9b0] sm:$0xf]
  %v732 = vld [vmem:[%s1 + $0x9b4] sm:$0xf]
  %v733 = vld [vmem:[%s1 + $0x9b8] sm:$0xf]
  %v734 = vld [vmem:[%s1 + $0x9bc] sm:$0xf]
  %v735 = vld [vmem:[%s1 + $0x9c0] sm:$0xf]
  %v736 = vld [vmem:[%s1 + $0x9c4] sm:$0xf]
  %v737 = vld [vmem:[%s1 + $0x9c8] sm:$0xf]
  %v738 = vld [vmem:[%s1 + $0x9cc] sm:$0xf]
  %v739 = vld [vmem:[%s1 + $0x9d0] sm:$0xf]
  %v740 = vld [vmem:[%s1 + $0x9d4] sm:$0xf]
  %v741 = vld [vmem:[%s1 + $0x9d8] sm:$0xf]
  %v742 = vld [vmem:[%s1 + $0x9dc] sm:$0xf]
  %v743 = vld [vmem:[%s1 + $0x9e0] sm:$0xf]
  %v744 = vld [vmem:[%s1 + $0x9e4] sm:$0xf]
  %v745 = vld [vmem:[%s1 + $0x9e8] sm:$0xf]
  %v746 = vld [vmem:[%s1 + $0x9ec] sm:$0xf]
  %v747 = vld [vmem:[%s1 + $0x9f0] sm:$0xf]
  %v748 = vld [vmem:[%s1 + $0x9f4] sm:$0xf]
  %v749 = vld [vmem:[%s1 + $0x9f8] sm:$0xf]
  %v750 = vld [vmem:[%s1 + $0x9fc] sm:$0xf]
  %v751 = vld [vmem:[%s1 + $0xa00] sm:$0xf]
  %v752 = vld [vmem:[%s1 + $0xa04] sm:$0xf]
  %v753 = vld [vmem:[%s1 + $0xa08] sm:$0xf]
  %v754 = vld [vmem:[%s1 + $0xa0c] sm:$0xf]
  %v755 = vld [vmem:[%s1 + $0xa10] sm:$0xf]
  %v756 = vld [vmem:[%s1 + $0xa14] sm:$0xf]
  %v757 = vld [vmem:[%s1 + $0xa18] sm:$0xf]
  %v758 = vld [vmem:[%s1 + $0xa1c] sm:$0xf]
  %v759 = vld [vmem:[%s2] sm:$0x1]
  %v761 = vperm.slane %v759, 0
  %v1411 = vunpack.c.l.b16 %v111
  %v1412 = vunpack.c.l.b16 %v112
  %v1413 = vunpack.c.l.b16 %v113
  %v1414 = vunpack.c.l.b16 %v114
  %v1415 = vunpack.c.l.b16 %v115
  %v1416 = vunpack.c.l.b16 %v116
  %v1417 = vunpack.c.l.b16 %v117
  %v1418 = vunpack.c.l.b16 %v118
  %v1419 = vunpack.c.l.b16 %v119
  %v1420 = vunpack.c.l.b16 %v120
  %v1421 = vunpack.c.l.b16 %v121
  %v1422 = vunpack.c.l.b16 %v122
  %v1423 = vunpack.c.l.b16 %v123
  %v1424 = vunpack.c.l.b16 %v124
  %v1425 = vunpack.c.l.b16 %v125
  %v1426 = vunpack.c.l.b16 %v126
  %v1427 = vunpack.c.l.b16 %v127
  %v1428 = vunpack.c.l.b16 %v128
  %v1429 = vunpack.c.l.b16 %v129
  %v1430 = vunpack.c.l.b16 %v130
  %v1431 = vunpack.c.l.b16 %v131
  %v1432 = vunpack.c.l.b16 %v132
  %v1433 = vunpack.c.l.b16 %v133
  %v1434 = vunpack.c.l.b16 %v134
  %v1435 = vunpack.c.l.b16 %v135
  %v1436 = vunpack.c.l.b16 %v136
  %v1437 = vunpack.c.l.b16 %v137
  %v1438 = vunpack.c.l.b16 %v138
  %v1439 = vunpack.c.l.b16 %v139
  %v1440 = vunpack.c.l.b16 %v140
  %v1441 = vunpack.c.l.b16 %v141
  %v1442 = vunpack.c.l.b16 %v142
  %v1443 = vunpack.c.l.b16 %v143
  %v1444 = vunpack.c.l.b16 %v144
  %v1445 = vunpack.c.l.b16 %v145
  %v1446 = vunpack.c.l.b16 %v146
  %v1447 = vunpack.c.l.b16 %v147
  %v1448 = vunpack.c.l.b16 %v148
  %v1449 = vunpack.c.l.b16 %v149
  %v1450 = vunpack.c.l.b16 %v150
  %v1451 = vunpack.c.l.b16 %v151
  %v1452 = vunpack.c.l.b16 %v152
  %v1453 = vunpack.c.l.b16 %v153
  %v1454 = vunpack.c.l.b16 %v154
  %v1455 = vunpack.c.l.b16 %v155
  %v1456 = vunpack.c.l.b16 %v156
  %v1457 = vunpack.c.l.b16 %v157
  %v1458 = vunpack.c.l.b16 %v158
  %v1459 = vunpack.c.l.b16 %v159
  %v1460 = vunpack.c.l.b16 %v160
  %v1461 = vunpack.c.l.b16 %v161
  %v1462 = vunpack.c.l.b16 %v162
  %v1463 = vunpack.c.l.b16 %v163
  %v1464 = vunpack.c.l.b16 %v164
  %v1465 = vunpack.c.l.b16 %v165
  %v1466 = vunpack.c.l.b16 %v166
  %v1467 = vunpack.c.l.b16 %v167
  %v1468 = vunpack.c.l.b16 %v168
  %v1469 = vunpack.c.l.b16 %v169
  %v1470 = vunpack.c.l.b16 %v170
  %v1471 = vunpack.c.l.b16 %v171
  %v1472 = vunpack.c.l.b16 %v172
  %v1473 = vunpack.c.l.b16 %v173
  %v1474 = vunpack.c.l.b16 %v174
  %v1475 = vunpack.c.l.b16 %v175
  %v1476 = vunpack.c.l.b16 %v176
  %v1477 = vunpack.c.l.b16 %v177
  %v1478 = vunpack.c.l.b16 %v178
  %v1479 = vunpack.c.l.b16 %v179
  %v1480 = vunpack.c.l.b16 %v180
  %v1481 = vunpack.c.l.b16 %v181
  %v1482 = vunpack.c.l.b16 %v182
  %v1483 = vunpack.c.l.b16 %v183
  %v1484 = vunpack.c.l.b16 %v184
  %v1485 = vunpack.c.l.b16 %v185
  %v1486 = vunpack.c.l.b16 %v186
  %v1487 = vunpack.c.l.b16 %v187
  %v1488 = vunpack.c.l.b16 %v188
  %v1489 = vunpack.c.l.b16 %v189
  %v1490 = vunpack.c.l.b16 %v190
  %v1491 = vunpack.c.l.b16 %v191
  %v1492 = vunpack.c.l.b16 %v192
  %v1493 = vunpack.c.l.b16 %v193
  %v1494 = vunpack.c.l.b16 %v194
  %v1495 = vunpack.c.l.b16 %v195
  %v1496 = vunpack.c.l.b16 %v196
  %v1497 = vunpack.c.l.b16 %v197
  %v1498 = vunpack.c.l.b16 %v198
  %v1499 = vunpack.c.l.b16 %v199
  %v1500 = vunpack.c.l.b16 %v200
  %v1501 = vunpack.c.l.b16 %v201
  %v1502 = vunpack.c.l.b16 %v202
  %v1503 = vunpack.c.l.b16 %v203
  %v1504 = vunpack.c.l.b16 %v204
  %v1505 = vunpack.c.l.b16 %v205
  %v1506 = vunpack.c.l.b16 %v206
  %v1507 = vunpack.c.l.b16 %v207
  %v1508 = vunpack.c.l.b16 %v208
  %v1509 = vunpack.c.l.b16 %v209
  %v1510 = vunpack.c.l.b16 %v210
  %v1511 = vunpack.c.l.b16 %v211
  %v1512 = vunpack.c.l.b16 %v212
  %v1513 = vunpack.c.l.b16 %v213
  %v1514 = vunpack.c.l.b16 %v214
  %v1515 = vunpack.c.l.b16 %v215
  %v1516 = vunpack.c.l.b16 %v216
  %v1517 = vunpack.c.l.b16 %v217
  %v1518 = vunpack.c.l.b16 %v218
  %v1519 = vunpack.c.l.b16 %v219
  %v1520 = vunpack.c.l.b16 %v220
  %v1521 = vunpack.c.l.b16 %v221
  %v1522 = vunpack.c.l.b16 %v222
  %v1523 = vunpack.c.l.b16 %v223
  %v1524 = vunpack.c.l.b16 %v224
  %v1525 = vunpack.c.l.b16 %v225
  %v1526 = vunpack.c.l.b16 %v226
  %v1527 = vunpack.c.l.b16 %v227
  %v1528 = vunpack.c.l.b16 %v228
  %v1529 = vunpack.c.l.b16 %v229
  %v1530 = vunpack.c.l.b16 %v230
  %v1531 = vunpack.c.l.b16 %v231
  %v1532 = vunpack.c.l.b16 %v232
  %v1533 = vunpack.c.l.b16 %v233
  %v1534 = vunpack.c.l.b16 %v234
  %v1535 = vunpack.c.l.b16 %v235
  %v1536 = vunpack.c.l.b16 %v236
  %v1537 = vunpack.c.l.b16 %v237
  %v1538 = vunpack.c.l.b16 %v238
  %v1539 = vunpack.c.l.b16 %v239
  %v1540 = vunpack.c.l.b16 %v240
  %v1541 = vunpack.c.l.b16 %v241
  %v1542 = vunpack.c.l.b16 %v242
  %v1543 = vunpack.c.l.b16 %v243
  %v1544 = vunpack.c.l.b16 %v244
  %v1545 = vunpack.c.l.b16 %v245
  %v1546 = vunpack.c.l.b16 %v246
  %v1547 = vunpack.c.l.b16 %v247
  %v1548 = vunpack.c.l.b16 %v248
  %v1549 = vunpack.c.l.b16 %v249
  %v1550 = vunpack.c.l.b16 %v250
  %v1551 = vunpack.c.l.b16 %v251
  %v1552 = vunpack.c.l.b16 %v252
  %v1553 = vunpack.c.l.b16 %v253
  %v1554 = vunpack.c.l.b16 %v254
  %v1555 = vunpack.c.l.b16 %v255
  %v1556 = vunpack.c.l.b16 %v256
  %v1557 = vunpack.c.l.b16 %v257
  %v1558 = vunpack.c.l.b16 %v258
  %v1559 = vunpack.c.l.b16 %v259
  %v1560 = vunpack.c.l.b16 %v260
  %v1561 = vunpack.c.l.b16 %v261
  %v1562 = vunpack.c.l.b16 %v262
  %v1563 = vunpack.c.l.b16 %v263
  %v1564 = vunpack.c.l.b16 %v264
  %v1565 = vunpack.c.l.b16 %v265
  %v1566 = vunpack.c.l.b16 %v266
  %v1567 = vunpack.c.l.b16 %v267
  %v1568 = vunpack.c.l.b16 %v268
  %v1569 = vunpack.c.l.b16 %v269
  %v1570 = vunpack.c.l.b16 %v270
  %v1571 = vunpack.c.l.b16 %v271
  %v1572 = vunpack.c.l.b16 %v272
  %v1573 = vunpack.c.l.b16 %v273
  %v1574 = vunpack.c.l.b16 %v274
  %v1575 = vunpack.c.l.b16 %v275
  %v1576 = vunpack.c.l.b16 %v276
  %v1577 = vunpack.c.l.b16 %v277
  %v1578 = vunpack.c.l.b16 %v278
  %v1579 = vunpack.c.l.b16 %v279
  %v1580 = vunpack.c.l.b16 %v280
  %v1581 = vunpack.c.l.b16 %v281
  %v1582 = vunpack.c.l.b16 %v282
  %v1583 = vunpack.c.l.b16 %v283
  %v1584 = vunpack.c.l.b16 %v284
  %v1585 = vunpack.c.l.b16 %v285
  %v1586 = vunpack.c.l.b16 %v286
  %v1587 = vunpack.c.l.b16 %v287
  %v1588 = vunpack.c.l.b16 %v288
  %v1589 = vunpack.c.l.b16 %v289
  %v1590 = vunpack.c.l.b16 %v290
  %v1591 = vunpack.c.l.b16 %v291
  %v1592 = vunpack.c.l.b16 %v292
  %v1593 = vunpack.c.l.b16 %v293
  %v1594 = vunpack.c.l.b16 %v294
  %v1595 = vunpack.c.l.b16 %v295
  %v1596 = vunpack.c.l.b16 %v296
  %v1597 = vunpack.c.l.b16 %v297
  %v1598 = vunpack.c.l.b16 %v298
  %v1599 = vunpack.c.l.b16 %v299
  %v1600 = vunpack.c.l.b16 %v300
  %v1601 = vunpack.c.l.b16 %v301
  %v1602 = vunpack.c.l.b16 %v302
  %v1603 = vunpack.c.l.b16 %v303
  %v1604 = vunpack.c.l.b16 %v304
  %v1605 = vunpack.c.l.b16 %v305
  %v1606 = vunpack.c.l.b16 %v306
  %v1607 = vunpack.c.l.b16 %v307
  %v1608 = vunpack.c.l.b16 %v308
  %v1609 = vunpack.c.l.b16 %v309
  %v1610 = vunpack.c.l.b16 %v310
  %v1611 = vunpack.c.l.b16 %v311
  %v1612 = vunpack.c.l.b16 %v312
  %v1613 = vunpack.c.l.b16 %v313
  %v1614 = vunpack.c.l.b16 %v314
  %v1615 = vunpack.c.l.b16 %v315
  %v1616 = vunpack.c.l.b16 %v316
  %v1617 = vunpack.c.l.b16 %v317
  %v1618 = vunpack.c.l.b16 %v318
  %v1619 = vunpack.c.l.b16 %v319
  %v1620 = vunpack.c.l.b16 %v320
  %v1621 = vunpack.c.l.b16 %v321
  %v1622 = vunpack.c.l.b16 %v322
  %v1623 = vunpack.c.l.b16 %v323
  %v1624 = vunpack.c.l.b16 %v324
  %v1625 = vunpack.c.l.b16 %v325
  %v1626 = vunpack.c.l.b16 %v326
  %v1627 = vunpack.c.l.b16 %v327
  %v1628 = vunpack.c.l.b16 %v328
  %v1629 = vunpack.c.l.b16 %v329
  %v1630 = vunpack.c.l.b16 %v330
  %v1631 = vunpack.c.l.b16 %v331
  %v1632 = vunpack.c.l.b16 %v332
  %v1633 = vunpack.c.l.b16 %v333
  %v1634 = vunpack.c.l.b16 %v334
  %v1635 = vunpack.c.l.b16 %v335
  %v1636 = vunpack.c.l.b16 %v336
  %v1637 = vunpack.c.l.b16 %v337
  %v1638 = vunpack.c.l.b16 %v338
  %v1639 = vunpack.c.l.b16 %v339
  %v1640 = vunpack.c.l.b16 %v340
  %v1641 = vunpack.c.l.b16 %v341
  %v1642 = vunpack.c.l.b16 %v342
  %v1643 = vunpack.c.l.b16 %v343
  %v1644 = vunpack.c.l.b16 %v344
  %v1645 = vunpack.c.l.b16 %v345
  %v1646 = vunpack.c.l.b16 %v346
  %v1647 = vunpack.c.l.b16 %v347
  %v1648 = vunpack.c.l.b16 %v348
  %v1649 = vunpack.c.l.b16 %v349
  %v1650 = vunpack.c.l.b16 %v350
  %v1651 = vunpack.c.l.b16 %v351
  %v1652 = vunpack.c.l.b16 %v352
  %v1653 = vunpack.c.l.b16 %v353
  %v1654 = vunpack.c.l.b16 %v354
  %v1655 = vunpack.c.l.b16 %v355
  %v1656 = vunpack.c.l.b16 %v356
  %v1657 = vunpack.c.l.b16 %v357
  %v1658 = vunpack.c.l.b16 %v358
  %v1659 = vunpack.c.l.b16 %v359
  %v1660 = vunpack.c.l.b16 %v360
  %v1661 = vunpack.c.l.b16 %v361
  %v1662 = vunpack.c.l.b16 %v362
  %v1663 = vunpack.c.l.b16 %v363
  %v1664 = vunpack.c.l.b16 %v364
  %v1665 = vunpack.c.l.b16 %v365
  %v1666 = vunpack.c.l.b16 %v366
  %v1667 = vunpack.c.l.b16 %v367
  %v1668 = vunpack.c.l.b16 %v368
  %v1669 = vunpack.c.l.b16 %v369
  %v1670 = vunpack.c.l.b16 %v370
  %v1671 = vunpack.c.l.b16 %v371
  %v1672 = vunpack.c.l.b16 %v372
  %v1673 = vunpack.c.l.b16 %v373
  %v1674 = vunpack.c.l.b16 %v374
  %v1675 = vunpack.c.l.b16 %v375
  %v1676 = vunpack.c.l.b16 %v376
  %v1677 = vunpack.c.l.b16 %v377
  %v1678 = vunpack.c.l.b16 %v378
  %v1679 = vunpack.c.l.b16 %v379
  %v1680 = vunpack.c.l.b16 %v380
  %v1681 = vunpack.c.l.b16 %v381
  %v1682 = vunpack.c.l.b16 %v382
  %v1683 = vunpack.c.l.b16 %v383
  %v1684 = vunpack.c.l.b16 %v384
  %v1685 = vunpack.c.l.b16 %v385
  %v1686 = vunpack.c.l.b16 %v386
  %v1687 = vunpack.c.l.b16 %v387
  %v1688 = vunpack.c.l.b16 %v388
  %v1689 = vunpack.c.l.b16 %v389
  %v1690 = vunpack.c.l.b16 %v390
  %v1691 = vunpack.c.l.b16 %v391
  %v1692 = vunpack.c.l.b16 %v392
  %v1693 = vunpack.c.l.b16 %v393
  %v1694 = vunpack.c.l.b16 %v394
  %v1695 = vunpack.c.l.b16 %v395
  %v1696 = vunpack.c.l.b16 %v396
  %v1697 = vunpack.c.l.b16 %v397
  %v1698 = vunpack.c.l.b16 %v398
  %v1699 = vunpack.c.l.b16 %v399
  %v1700 = vunpack.c.l.b16 %v400
  %v1701 = vunpack.c.l.b16 %v401
  %v1702 = vunpack.c.l.b16 %v402
  %v1703 = vunpack.c.l.b16 %v403
  %v1704 = vunpack.c.l.b16 %v404
  %v1705 = vunpack.c.l.b16 %v405
  %v1706 = vunpack.c.l.b16 %v406
  %v1707 = vunpack.c.l.b16 %v407
  %v1708 = vunpack.c.l.b16 %v408
  %v1709 = vunpack.c.l.b16 %v409
  %v1710 = vunpack.c.l.b16 %v410
  %v1711 = vunpack.c.l.b16 %v411
  %v1712 = vunpack.c.l.b16 %v412
  %v1713 = vunpack.c.l.b16 %v413
  %v1714 = vunpack.c.l.b16 %v414
  %v1715 = vunpack.c.l.b16 %v415
  %v1716 = vunpack.c.l.b16 %v416
  %v1717 = vunpack.c.l.b16 %v417
  %v1718 = vunpack.c.l.b16 %v418
  %v1719 = vunpack.c.l.b16 %v419
  %v1720 = vunpack.c.l.b16 %v420
  %v1721 = vunpack.c.l.b16 %v421
  %v1722 = vunpack.c.l.b16 %v422
  %v1723 = vunpack.c.l.b16 %v423
  %v1724 = vunpack.c.l.b16 %v424
  %v1725 = vunpack.c.l.b16 %v425
  %v1726 = vunpack.c.l.b16 %v426
  %v1727 = vunpack.c.l.b16 %v427
  %v1728 = vunpack.c.l.b16 %v428
  %v1729 = vunpack.c.l.b16 %v429
  %v1730 = vunpack.c.l.b16 %v430
  %v1731 = vunpack.c.l.b16 %v431
  %v1732 = vunpack.c.l.b16 %v432
  %v1733 = vunpack.c.l.b16 %v433
  %v1734 = vunpack.c.l.b16 %v434
  %v1735 = vunpack.c.l.b16 %v435
  %v1736 = vunpack.c.l.b16 %v436
  %v1737 = vunpack.c.l.b16 %v437
  %v1738 = vunpack.c.l.b16 %v438
  %v1739 = vunpack.c.l.b16 %v439
  %v1740 = vunpack.c.l.b16 %v440
  %v1741 = vunpack.c.l.b16 %v441
  %v1742 = vunpack.c.l.b16 %v442
  %v1743 = vunpack.c.l.b16 %v443
  %v1744 = vunpack.c.l.b16 %v444
  %v1745 = vunpack.c.l.b16 %v445
  %v1746 = vunpack.c.l.b16 %v446
  %v1747 = vunpack.c.l.b16 %v447
  %v1748 = vunpack.c.l.b16 %v448
  %v1749 = vunpack.c.l.b16 %v449
  %v1750 = vunpack.c.l.b16 %v450
  %v1751 = vunpack.c.l.b16 %v451
  %v1752 = vunpack.c.l.b16 %v452
  %v1753 = vunpack.c.l.b16 %v453
  %v1754 = vunpack.c.l.b16 %v454
  %v1755 = vunpack.c.l.b16 %v455
  %v1756 = vunpack.c.l.b16 %v456
  %v1757 = vunpack.c.l.b16 %v457
  %v1758 = vunpack.c.l.b16 %v458
  %v1759 = vunpack.c.l.b16 %v459
  %v1760 = vunpack.c.l.b16 %v460
  %v1761 = vunpack.c.l.b16 %v461
  %v1762 = vunpack.c.l.b16 %v462
  %v1763 = vunpack.c.l.b16 %v463
  %v1764 = vunpack.c.l.b16 %v464
  %v1765 = vunpack.c.l.b16 %v465
  %v1766 = vunpack.c.l.b16 %v466
  %v1767 = vunpack.c.l.b16 %v467
  %v1768 = vunpack.c.l.b16 %v468
  %v1769 = vunpack.c.l.b16 %v469
  %v1770 = vunpack.c.l.b16 %v470
  %v1771 = vunpack.c.l.b16 %v471
  %v1772 = vunpack.c.l.b16 %v472
  %v1773 = vunpack.c.l.b16 %v473
  %v1774 = vunpack.c.l.b16 %v474
  %v1775 = vunpack.c.l.b16 %v475
  %v1776 = vunpack.c.l.b16 %v476
  %v1777 = vunpack.c.l.b16 %v477
  %v1778 = vunpack.c.l.b16 %v478
  %v1779 = vunpack.c.l.b16 %v479
  %v1780 = vunpack.c.l.b16 %v480
  %v1781 = vunpack.c.l.b16 %v481
  %v1782 = vunpack.c.l.b16 %v482
  %v1783 = vunpack.c.l.b16 %v483
  %v1784 = vunpack.c.l.b16 %v484
  %v1785 = vunpack.c.l.b16 %v485
  %v1786 = vunpack.c.l.b16 %v486
  %v1787 = vunpack.c.l.b16 %v487
  %v1788 = vunpack.c.l.b16 %v488
  %v1789 = vunpack.c.l.b16 %v489
  %v1790 = vunpack.c.l.b16 %v490
  %v1791 = vunpack.c.l.b16 %v491
  %v1792 = vunpack.c.l.b16 %v492
  %v1793 = vunpack.c.l.b16 %v493
  %v1794 = vunpack.c.l.b16 %v494
  %v1795 = vunpack.c.l.b16 %v495
  %v1796 = vunpack.c.l.b16 %v496
  %v1797 = vunpack.c.l.b16 %v497
  %v1798 = vunpack.c.l.b16 %v498
  %v1799 = vunpack.c.l.b16 %v499
  %v1800 = vunpack.c.l.b16 %v500
  %v1801 = vunpack.c.l.b16 %v501
  %v1802 = vunpack.c.l.b16 %v502
  %v1803 = vunpack.c.l.b16 %v503
  %v1804 = vunpack.c.l.b16 %v504
  %v1805 = vunpack.c.l.b16 %v505
  %v1806 = vunpack.c.l.b16 %v506
  %v1807 = vunpack.c.l.b16 %v507
  %v1808 = vunpack.c.l.b16 %v508
  %v1809 = vunpack.c.l.b16 %v509
  %v1810 = vunpack.c.l.b16 %v510
  %v1811 = vunpack.c.l.b16 %v511
  %v1812 = vunpack.c.l.b16 %v512
  %v1813 = vunpack.c.l.b16 %v513
  %v1814 = vunpack.c.l.b16 %v514
  %v1815 = vunpack.c.l.b16 %v515
  %v1816 = vunpack.c.l.b16 %v516
  %v1817 = vunpack.c.l.b16 %v517
  %v1818 = vunpack.c.l.b16 %v518
  %v1819 = vunpack.c.l.b16 %v519
  %v1820 = vunpack.c.l.b16 %v520
  %v1821 = vunpack.c.l.b16 %v521
  %v1822 = vunpack.c.l.b16 %v522
  %v1823 = vunpack.c.l.b16 %v523
  %v1824 = vunpack.c.l.b16 %v524
  %v1825 = vunpack.c.l.b16 %v525
  %v1826 = vunpack.c.l.b16 %v526
  %v1827 = vunpack.c.l.b16 %v527
  %v1828 = vunpack.c.l.b16 %v528
  %v1829 = vunpack.c.l.b16 %v529
  %v1830 = vunpack.c.l.b16 %v530
  %v1831 = vunpack.c.l.b16 %v531
  %v1832 = vunpack.c.l.b16 %v532
  %v1833 = vunpack.c.l.b16 %v533
  %v1834 = vunpack.c.l.b16 %v534
  %v1835 = vunpack.c.l.b16 %v535
  %v1836 = vunpack.c.l.b16 %v536
  %v1837 = vunpack.c.l.b16 %v537
  %v1838 = vunpack.c.l.b16 %v538
  %v1839 = vunpack.c.l.b16 %v539
  %v1840 = vunpack.c.l.b16 %v540
  %v1841 = vunpack.c.l.b16 %v541
  %v1842 = vunpack.c.l.b16 %v542
  %v1843 = vunpack.c.l.b16 %v543
  %v1844 = vunpack.c.l.b16 %v544
  %v1845 = vunpack.c.l.b16 %v545
  %v1846 = vunpack.c.l.b16 %v546
  %v1847 = vunpack.c.l.b16 %v547
  %v1848 = vunpack.c.l.b16 %v548
  %v1849 = vunpack.c.l.b16 %v549
  %v1850 = vunpack.c.l.b16 %v550
  %v1851 = vunpack.c.l.b16 %v551
  %v1852 = vunpack.c.l.b16 %v552
  %v1853 = vunpack.c.l.b16 %v553
  %v1854 = vunpack.c.l.b16 %v554
  %v1855 = vunpack.c.l.b16 %v555
  %v1856 = vunpack.c.l.b16 %v556
  %v1857 = vunpack.c.l.b16 %v557
  %v1858 = vunpack.c.l.b16 %v558
  %v1859 = vunpack.c.l.b16 %v559
  %v1860 = vunpack.c.l.b16 %v560
  %v1861 = vunpack.c.l.b16 %v561
  %v1862 = vunpack.c.l.b16 %v562
  %v1863 = vunpack.c.l.b16 %v563
  %v1864 = vunpack.c.l.b16 %v564
  %v1865 = vunpack.c.l.b16 %v565
  %v1866 = vunpack.c.l.b16 %v566
  %v1867 = vunpack.c.l.b16 %v567
  %v1868 = vunpack.c.l.b16 %v568
  %v1869 = vunpack.c.l.b16 %v569
  %v1870 = vunpack.c.l.b16 %v570
  %v1871 = vunpack.c.l.b16 %v571
  %v1872 = vunpack.c.l.b16 %v572
  %v1873 = vunpack.c.l.b16 %v573
  %v1874 = vunpack.c.l.b16 %v574
  %v1875 = vunpack.c.l.b16 %v575
  %v1876 = vunpack.c.l.b16 %v576
  %v1877 = vunpack.c.l.b16 %v577
  %v1878 = vunpack.c.l.b16 %v578
  %v1879 = vunpack.c.l.b16 %v579
  %v1880 = vunpack.c.l.b16 %v580
  %v1881 = vunpack.c.l.b16 %v581
  %v1882 = vunpack.c.l.b16 %v582
  %v1883 = vunpack.c.l.b16 %v583
  %v1884 = vunpack.c.l.b16 %v584
  %v1885 = vunpack.c.l.b16 %v585
  %v1886 = vunpack.c.l.b16 %v586
  %v1887 = vunpack.c.l.b16 %v587
  %v1888 = vunpack.c.l.b16 %v588
  %v1889 = vunpack.c.l.b16 %v589
  %v1890 = vunpack.c.l.b16 %v590
  %v1891 = vunpack.c.l.b16 %v591
  %v1892 = vunpack.c.l.b16 %v592
  %v1893 = vunpack.c.l.b16 %v593
  %v1894 = vunpack.c.l.b16 %v594
  %v1895 = vunpack.c.l.b16 %v595
  %v1896 = vunpack.c.l.b16 %v596
  %v1897 = vunpack.c.l.b16 %v597
  %v1898 = vunpack.c.l.b16 %v598
  %v1899 = vunpack.c.l.b16 %v599
  %v1900 = vunpack.c.l.b16 %v600
  %v1901 = vunpack.c.l.b16 %v601
  %v1902 = vunpack.c.l.b16 %v602
  %v1903 = vunpack.c.l.b16 %v603
  %v1904 = vunpack.c.l.b16 %v604
  %v1905 = vunpack.c.l.b16 %v605
  %v1906 = vunpack.c.l.b16 %v606
  %v1907 = vunpack.c.l.b16 %v607
  %v1908 = vunpack.c.l.b16 %v608
  %v1909 = vunpack.c.l.b16 %v609
  %v1910 = vunpack.c.l.b16 %v610
  %v1911 = vunpack.c.l.b16 %v611
  %v1912 = vunpack.c.l.b16 %v612
  %v1913 = vunpack.c.l.b16 %v613
  %v1914 = vunpack.c.l.b16 %v614
  %v1915 = vunpack.c.l.b16 %v615
  %v1916 = vunpack.c.l.b16 %v616
  %v1917 = vunpack.c.l.b16 %v617
  %v1918 = vunpack.c.l.b16 %v618
  %v1919 = vunpack.c.l.b16 %v619
  %v1920 = vunpack.c.l.b16 %v620
  %v1921 = vunpack.c.l.b16 %v621
  %v1922 = vunpack.c.l.b16 %v622
  %v1923 = vunpack.c.l.b16 %v623
  %v1924 = vunpack.c.l.b16 %v624
  %v1925 = vunpack.c.l.b16 %v625
  %v1926 = vunpack.c.l.b16 %v626
  %v1927 = vunpack.c.l.b16 %v627
  %v1928 = vunpack.c.l.b16 %v628
  %v1929 = vunpack.c.l.b16 %v629
  %v1930 = vunpack.c.l.b16 %v630
  %v1931 = vunpack.c.l.b16 %v631
  %v1932 = vunpack.c.l.b16 %v632
  %v1933 = vunpack.c.l.b16 %v633
  %v1934 = vunpack.c.l.b16 %v634
  %v1935 = vunpack.c.l.b16 %v635
  %v1936 = vunpack.c.l.b16 %v636
  %v1937 = vunpack.c.l.b16 %v637
  %v1938 = vunpack.c.l.b16 %v638
  %v1939 = vunpack.c.l.b16 %v639
  %v1940 = vunpack.c.l.b16 %v640
  %v1941 = vunpack.c.l.b16 %v641
  %v1942 = vunpack.c.l.b16 %v642
  %v1943 = vunpack.c.l.b16 %v643
  %v1944 = vunpack.c.l.b16 %v644
  %v1945 = vunpack.c.l.b16 %v645
  %v1946 = vunpack.c.l.b16 %v646
  %v1947 = vunpack.c.l.b16 %v647
  %v1948 = vunpack.c.l.b16 %v648
  %v1949 = vunpack.c.l.b16 %v649
  %v1950 = vunpack.c.l.b16 %v650
  %v1951 = vunpack.c.l.b16 %v651
  %v1952 = vunpack.c.l.b16 %v652
  %v1953 = vunpack.c.l.b16 %v653
  %v1954 = vunpack.c.l.b16 %v654
  %v1955 = vunpack.c.l.b16 %v655
  %v1956 = vunpack.c.l.b16 %v656
  %v1957 = vunpack.c.l.b16 %v657
  %v1958 = vunpack.c.l.b16 %v658
  %v1959 = vunpack.c.l.b16 %v659
  %v1960 = vunpack.c.l.b16 %v660
  %v1961 = vunpack.c.l.b16 %v661
  %v1962 = vunpack.c.l.b16 %v662
  %v1963 = vunpack.c.l.b16 %v663
  %v1964 = vunpack.c.l.b16 %v664
  %v1965 = vunpack.c.l.b16 %v665
  %v1966 = vunpack.c.l.b16 %v666
  %v1967 = vunpack.c.l.b16 %v667
  %v1968 = vunpack.c.l.b16 %v668
  %v1969 = vunpack.c.l.b16 %v669
  %v1970 = vunpack.c.l.b16 %v670
  %v1971 = vunpack.c.l.b16 %v671
  %v1972 = vunpack.c.l.b16 %v672
  %v1973 = vunpack.c.l.b16 %v673
  %v1974 = vunpack.c.l.b16 %v674
  %v1975 = vunpack.c.l.b16 %v675
  %v1976 = vunpack.c.l.b16 %v676
  %v1977 = vunpack.c.l.b16 %v677
  %v1978 = vunpack.c.l.b16 %v678
  %v1979 = vunpack.c.l.b16 %v679
  %v1980 = vunpack.c.l.b16 %v680
  %v1981 = vunpack.c.l.b16 %v681
  %v1982 = vunpack.c.l.b16 %v682
  %v1983 = vunpack.c.l.b16 %v683
  %v1984 = vunpack.c.l.b16 %v684
  %v1985 = vunpack.c.l.b16 %v685
  %v1986 = vunpack.c.l.b16 %v686
  %v1987 = vunpack.c.l.b16 %v687
  %v1988 = vunpack.c.l.b16 %v688
  %v1989 = vunpack.c.l.b16 %v689
  %v1990 = vunpack.c.l.b16 %v690
  %v1991 = vunpack.c.l.b16 %v691
  %v1992 = vunpack.c.l.b16 %v692
  %v1993 = vunpack.c.l.b16 %v693
  %v1994 = vunpack.c.l.b16 %v694
  %v1995 = vunpack.c.l.b16 %v695
  %v1996 = vunpack.c.l.b16 %v696
  %v1997 = vunpack.c.l.b16 %v697
  %v1998 = vunpack.c.l.b16 %v698
  %v1999 = vunpack.c.l.b16 %v699
  %v2000 = vunpack.c.l.b16 %v700
  %v2001 = vunpack.c.l.b16 %v701
  %v2002 = vunpack.c.l.b16 %v702
  %v2003 = vunpack.c.l.b16 %v703
  %v2004 = vunpack.c.l.b16 %v704
  %v2005 = vunpack.c.l.b16 %v705
  %v2006 = vunpack.c.l.b16 %v706
  %v2007 = vunpack.c.l.b16 %v707
  %v2008 = vunpack.c.l.b16 %v708
  %v2009 = vunpack.c.l.b16 %v709
  %v2010 = vunpack.c.l.b16 %v710
  %v2011 = vunpack.c.l.b16 %v711
  %v2012 = vunpack.c.l.b16 %v712
  %v2013 = vunpack.c.l.b16 %v713
  %v2014 = vunpack.c.l.b16 %v714
  %v2015 = vunpack.c.l.b16 %v715
  %v2016 = vunpack.c.l.b16 %v716
  %v2017 = vunpack.c.l.b16 %v717
  %v2018 = vunpack.c.l.b16 %v718
  %v2019 = vunpack.c.l.b16 %v719
  %v2020 = vunpack.c.l.b16 %v720
  %v2021 = vunpack.c.l.b16 %v721
  %v2022 = vunpack.c.l.b16 %v722
  %v2023 = vunpack.c.l.b16 %v723
  %v2024 = vunpack.c.l.b16 %v724
  %v2025 = vunpack.c.l.b16 %v725
  %v2026 = vunpack.c.l.b16 %v726
  %v2027 = vunpack.c.l.b16 %v727
  %v2028 = vunpack.c.l.b16 %v728
  %v2029 = vunpack.c.l.b16 %v729
  %v2030 = vunpack.c.l.b16 %v730
  %v2031 = vunpack.c.l.b16 %v731
  %v2032 = vunpack.c.l.b16 %v732
  %v2033 = vunpack.c.l.b16 %v733
  %v2034 = vunpack.c.l.b16 %v734
  %v2035 = vunpack.c.l.b16 %v735
  %v2036 = vunpack.c.l.b16 %v736
  %v2037 = vunpack.c.l.b16 %v737
  %v2038 = vunpack.c.l.b16 %v738
  %v2039 = vunpack.c.l.b16 %v739
  %v2040 = vunpack.c.l.b16 %v740
  %v2041 = vunpack.c.l.b16 %v741
  %v2042 = vunpack.c.l.b16 %v742
  %v2043 = vunpack.c.l.b16 %v743
  %v2044 = vunpack.c.l.b16 %v744
  %v2045 = vunpack.c.l.b16 %v745
  %v2046 = vunpack.c.l.b16 %v746
  %v2047 = vunpack.c.l.b16 %v747
  %v2048 = vunpack.c.l.b16 %v748
  %v2049 = vunpack.c.l.b16 %v749
  %v2050 = vunpack.c.l.b16 %v750
  %v2051 = vunpack.c.l.b16 %v751
  %v2052 = vunpack.c.l.b16 %v752
  %v2053 = vunpack.c.l.b16 %v753
  %v2054 = vunpack.c.l.b16 %v754
  %v2055 = vunpack.c.l.b16 %v755
  %v2056 = vunpack.c.l.b16 %v756
  %v2057 = vunpack.c.l.b16 %v757
  %v2058 = vunpack.c.l.b16 %v758
  %v2059 = vpack.c.b16 %v1412, %v1411
  %v2060 = vpack.c.b16 %v1414, %v1413
  %v2061 = vpack.c.b16 %v1416, %v1415
  %v2062 = vpack.c.b16 %v1418, %v1417
  %v2063 = vpack.c.b16 %v1420, %v1419
  %v2064 = vpack.c.b16 %v1422, %v1421
  %v2065 = vpack.c.b16 %v1424, %v1423
  %v2066 = vpack.c.b16 %v1426, %v1425
  %v2067 = vpack.c.b16 %v1428, %v1427
  %v2068 = vpack.c.b16 %v1430, %v1429
  %v2069 = vpack.c.b16 %v1432, %v1431
  %v2070 = vpack.c.b16 %v1434, %v1433
  %v2071 = vpack.c.b16 %v1436, %v1435
  %v2072 = vpack.c.b16 %v1438, %v1437
  %v2073 = vpack.c.b16 %v1440, %v1439
  %v2074 = vpack.c.b16 %v1442, %v1441
  %v2075 = vpack.c.b16 %v1444, %v1443
  %v2076 = vpack.c.b16 %v1446, %v1445
  %v2077 = vpack.c.b16 %v1448, %v1447
  %v2078 = vpack.c.b16 %v1450, %v1449
  %v2079 = vpack.c.b16 %v1452, %v1451
  %v2080 = vpack.c.b16 %v1454, %v1453
  %v2081 = vpack.c.b16 %v1456, %v1455
  %v2082 = vpack.c.b16 %v1458, %v1457
  %v2083 = vpack.c.b16 %v1460, %v1459
  %v2084 = vpack.c.b16 %v1462, %v1461
  %v2085 = vpack.c.b16 %v1464, %v1463
  %v2086 = vpack.c.b16 %v1466, %v1465
  %v2087 = vpack.c.b16 %v1468, %v1467
  %v2088 = vpack.c.b16 %v1470, %v1469
  %v2089 = vpack.c.b16 %v1472, %v1471
  %v2090 = vpack.c.b16 %v1474, %v1473
  %v2091 = vpack.c.b16 %v1476, %v1475
  %v2092 = vpack.c.b16 %v1478, %v1477
  %v2093 = vpack.c.b16 %v1480, %v1479
  %v2094 = vpack.c.b16 %v1482, %v1481
  %v2095 = vpack.c.b16 %v1484, %v1483
  %v2096 = vpack.c.b16 %v1486, %v1485
  %v2097 = vpack.c.b16 %v1488, %v1487
  %v2098 = vpack.c.b16 %v1490, %v1489
  %v2099 = vpack.c.b16 %v1492, %v1491
  %v2100 = vpack.c.b16 %v1494, %v1493
  %v2101 = vpack.c.b16 %v1496, %v1495
  %v2102 = vpack.c.b16 %v1498, %v1497
  %v2103 = vpack.c.b16 %v1500, %v1499
  %v2104 = vpack.c.b16 %v1502, %v1501
  %v2105 = vpack.c.b16 %v1504, %v1503
  %v2106 = vpack.c.b16 %v1506, %v1505
  %v2107 = vpack.c.b16 %v1508, %v1507
  %v2108 = vpack.c.b16 %v1510, %v1509
  %v2109 = vpack.c.b16 %v1512, %v1511
  %v2110 = vpack.c.b16 %v1514, %v1513
  %v2111 = vpack.c.b16 %v1516, %v1515
  %v2112 = vpack.c.b16 %v1518, %v1517
  %v2113 = vpack.c.b16 %v1520, %v1519
  %v2114 = vpack.c.b16 %v1522, %v1521
  %v2115 = vpack.c.b16 %v1524, %v1523
  %v2116 = vpack.c.b16 %v1526, %v1525
  %v2117 = vpack.c.b16 %v1528, %v1527
  %v2118 = vpack.c.b16 %v1530, %v1529
  %v2119 = vpack.c.b16 %v1532, %v1531
  %v2120 = vpack.c.b16 %v1534, %v1533
  %v2121 = vpack.c.b16 %v1536, %v1535
  %v2122 = vpack.c.b16 %v1538, %v1537
  %v2123 = vpack.c.b16 %v1540, %v1539
  %v2124 = vpack.c.b16 %v1542, %v1541
  %v2125 = vpack.c.b16 %v1544, %v1543
  %v2126 = vpack.c.b16 %v1546, %v1545
  %v2127 = vpack.c.b16 %v1548, %v1547
  %v2128 = vpack.c.b16 %v1550, %v1549
  %v2129 = vpack.c.b16 %v1552, %v1551
  %v2130 = vpack.c.b16 %v1554, %v1553
  %v2131 = vpack.c.b16 %v1556, %v1555
  %v2132 = vpack.c.b16 %v1558, %v1557
  %v2133 = vpack.c.b16 %v1560, %v1559
  %v2134 = vpack.c.b16 %v1562, %v1561
  %v2135 = vpack.c.b16 %v1564, %v1563
  %v2136 = vpack.c.b16 %v1566, %v1565
  %v2137 = vpack.c.b16 %v1568, %v1567
  %v2138 = vpack.c.b16 %v1570, %v1569
  %v2139 = vpack.c.b16 %v1572, %v1571
  %v2140 = vpack.c.b16 %v1574, %v1573
  %v2141 = vpack.c.b16 %v1576, %v1575
  %v2142 = vpack.c.b16 %v1578, %v1577
  %v2143 = vpack.c.b16 %v1580, %v1579
  %v2144 = vpack.c.b16 %v1582, %v1581
  %v2145 = vpack.c.b16 %v1584, %v1583
  %v2146 = vpack.c.b16 %v1586, %v1585
  %v2147 = vpack.c.b16 %v1588, %v1587
  %v2148 = vpack.c.b16 %v1590, %v1589
  %v2149 = vpack.c.b16 %v1592, %v1591
  %v2150 = vpack.c.b16 %v1594, %v1593
  %v2151 = vpack.c.b16 %v1596, %v1595
  %v2152 = vpack.c.b16 %v1598, %v1597
  %v2153 = vpack.c.b16 %v1600, %v1599
  %v2154 = vpack.c.b16 %v1602, %v1601
  %v2155 = vpack.c.b16 %v1604, %v1603
  %v2156 = vpack.c.b16 %v1606, %v1605
  %v2157 = vpack.c.b16 %v1608, %v1607
  %v2158 = vpack.c.b16 %v1610, %v1609
  %v2159 = vpack.c.b16 %v1612, %v1611
  %v2160 = vpack.c.b16 %v1614, %v1613
  %v2161 = vpack.c.b16 %v1616, %v1615
  %v2162 = vpack.c.b16 %v1618, %v1617
  %v2163 = vpack.c.b16 %v1620, %v1619
  %v2164 = vpack.c.b16 %v1622, %v1621
  %v2165 = vpack.c.b16 %v1624, %v1623
  %v2166 = vpack.c.b16 %v1626, %v1625
  %v2167 = vpack.c.b16 %v1628, %v1627
  %v2168 = vpack.c.b16 %v1630, %v1629
  %v2169 = vpack.c.b16 %v1632, %v1631
  %v2170 = vpack.c.b16 %v1634, %v1633
  %v2171 = vpack.c.b16 %v1636, %v1635
  %v2172 = vpack.c.b16 %v1638, %v1637
  %v2173 = vpack.c.b16 %v1640, %v1639
  %v2174 = vpack.c.b16 %v1642, %v1641
  %v2175 = vpack.c.b16 %v1644, %v1643
  %v2176 = vpack.c.b16 %v1646, %v1645
  %v2177 = vpack.c.b16 %v1648, %v1647
  %v2178 = vpack.c.b16 %v1650, %v1649
  %v2179 = vpack.c.b16 %v1652, %v1651
  %v2180 = vpack.c.b16 %v1654, %v1653
  %v2181 = vpack.c.b16 %v1656, %v1655
  %v2182 = vpack.c.b16 %v1658, %v1657
  %v2183 = vpack.c.b16 %v1660, %v1659
  %v2184 = vpack.c.b16 %v1662, %v1661
  %v2185 = vpack.c.b16 %v1664, %v1663
  %v2186 = vpack.c.b16 %v1666, %v1665
  %v2187 = vpack.c.b16 %v1668, %v1667
  %v2188 = vpack.c.b16 %v1670, %v1669
  %v2189 = vpack.c.b16 %v1672, %v1671
  %v2190 = vpack.c.b16 %v1674, %v1673
  %v2191 = vpack.c.b16 %v1676, %v1675
  %v2192 = vpack.c.b16 %v1678, %v1677
  %v2193 = vpack.c.b16 %v1680, %v1679
  %v2194 = vpack.c.b16 %v1682, %v1681
  %v2195 = vpack.c.b16 %v1684, %v1683
  %v2196 = vpack.c.b16 %v1686, %v1685
  %v2197 = vpack.c.b16 %v1688, %v1687
  %v2198 = vpack.c.b16 %v1690, %v1689
  %v2199 = vpack.c.b16 %v1692, %v1691
  %v2200 = vpack.c.b16 %v1694, %v1693
  %v2201 = vpack.c.b16 %v1696, %v1695
  %v2202 = vpack.c.b16 %v1698, %v1697
  %v2203 = vpack.c.b16 %v1700, %v1699
  %v2204 = vpack.c.b16 %v1702, %v1701
  %v2205 = vpack.c.b16 %v1704, %v1703
  %v2206 = vpack.c.b16 %v1706, %v1705
  %v2207 = vpack.c.b16 %v1708, %v1707
  %v2208 = vpack.c.b16 %v1710, %v1709
  %v2209 = vpack.c.b16 %v1712, %v1711
  %v2210 = vpack.c.b16 %v1714, %v1713
  %v2211 = vpack.c.b16 %v1716, %v1715
  %v2212 = vpack.c.b16 %v1718, %v1717
  %v2213 = vpack.c.b16 %v1720, %v1719
  %v2214 = vpack.c.b16 %v1722, %v1721
  %v2215 = vpack.c.b16 %v1724, %v1723
  %v2216 = vpack.c.b16 %v1726, %v1725
  %v2217 = vpack.c.b16 %v1728, %v1727
  %v2218 = vpack.c.b16 %v1730, %v1729
  %v2219 = vpack.c.b16 %v1732, %v1731
  %v2220 = vpack.c.b16 %v1734, %v1733
  %v2221 = vpack.c.b16 %v1736, %v1735
  %v2222 = vpack.c.b16 %v1738, %v1737
  %v2223 = vpack.c.b16 %v1740, %v1739
  %v2224 = vpack.c.b16 %v1742, %v1741
  %v2225 = vpack.c.b16 %v1744, %v1743
  %v2226 = vpack.c.b16 %v1746, %v1745
  %v2227 = vpack.c.b16 %v1748, %v1747
  %v2228 = vpack.c.b16 %v1750, %v1749
  %v2229 = vpack.c.b16 %v1752, %v1751
  %v2230 = vpack.c.b16 %v1754, %v1753
  %v2231 = vpack.c.b16 %v1756, %v1755
  %v2232 = vpack.c.b16 %v1758, %v1757
  %v2233 = vpack.c.b16 %v1760, %v1759
  %v2234 = vpack.c.b16 %v1762, %v1761
  %v2235 = vpack.c.b16 %v1764, %v1763
  %v2236 = vpack.c.b16 %v1766, %v1765
  %v2237 = vpack.c.b16 %v1768, %v1767
  %v2238 = vpack.c.b16 %v1770, %v1769
  %v2239 = vpack.c.b16 %v1772, %v1771
  %v2240 = vpack.c.b16 %v1774, %v1773
  %v2241 = vpack.c.b16 %v1776, %v1775
  %v2242 = vpack.c.b16 %v1778, %v1777
  %v2243 = vpack.c.b16 %v1780, %v1779
  %v2244 = vpack.c.b16 %v1782, %v1781
  %v2245 = vpack.c.b16 %v1784, %v1783
  %v2246 = vpack.c.b16 %v1786, %v1785
  %v2247 = vpack.c.b16 %v1788, %v1787
  %v2248 = vpack.c.b16 %v1790, %v1789
  %v2249 = vpack.c.b16 %v1792, %v1791
  %v2250 = vpack.c.b16 %v1794, %v1793
  %v2251 = vpack.c.b16 %v1796, %v1795
  %v2252 = vpack.c.b16 %v1798, %v1797
  %v2253 = vpack.c.b16 %v1800, %v1799
  %v2254 = vpack.c.b16 %v1802, %v1801
  %v2255 = vpack.c.b16 %v1804, %v1803
  %v2256 = vpack.c.b16 %v1806, %v1805
  %v2257 = vpack.c.b16 %v1808, %v1807
  %v2258 = vpack.c.b16 %v1810, %v1809
  %v2259 = vpack.c.b16 %v1812, %v1811
  %v2260 = vpack.c.b16 %v1814, %v1813
  %v2261 = vpack.c.b16 %v1816, %v1815
  %v2262 = vpack.c.b16 %v1818, %v1817
  %v2263 = vpack.c.b16 %v1820, %v1819
  %v2264 = vpack.c.b16 %v1822, %v1821
  %v2265 = vpack.c.b16 %v1824, %v1823
  %v2266 = vpack.c.b16 %v1826, %v1825
  %v2267 = vpack.c.b16 %v1828, %v1827
  %v2268 = vpack.c.b16 %v1830, %v1829
  %v2269 = vpack.c.b16 %v1832, %v1831
  %v2270 = vpack.c.b16 %v1834, %v1833
  %v2271 = vpack.c.b16 %v1836, %v1835
  %v2272 = vpack.c.b16 %v1838, %v1837
  %v2273 = vpack.c.b16 %v1840, %v1839
  %v2274 = vpack.c.b16 %v1842, %v1841
  %v2275 = vpack.c.b16 %v1844, %v1843
  %v2276 = vpack.c.b16 %v1846, %v1845
  %v2277 = vpack.c.b16 %v1848, %v1847
  %v2278 = vpack.c.b16 %v1850, %v1849
  %v2279 = vpack.c.b16 %v1852, %v1851
  %v2280 = vpack.c.b16 %v1854, %v1853
  %v2281 = vpack.c.b16 %v1856, %v1855
  %v2282 = vpack.c.b16 %v1858, %v1857
  %v2283 = vpack.c.b16 %v1860, %v1859
  %v2284 = vpack.c.b16 %v1862, %v1861
  %v2285 = vpack.c.b16 %v1864, %v1863
  %v2286 = vpack.c.b16 %v1866, %v1865
  %v2287 = vpack.c.b16 %v1868, %v1867
  %v2288 = vpack.c.b16 %v1870, %v1869
  %v2289 = vpack.c.b16 %v1872, %v1871
  %v2290 = vpack.c.b16 %v1874, %v1873
  %v2291 = vpack.c.b16 %v1876, %v1875
  %v2292 = vpack.c.b16 %v1878, %v1877
  %v2293 = vpack.c.b16 %v1880, %v1879
  %v2294 = vpack.c.b16 %v1882, %v1881
  %v2295 = vpack.c.b16 %v1884, %v1883
  %v2296 = vpack.c.b16 %v1886, %v1885
  %v2297 = vpack.c.b16 %v1888, %v1887
  %v2298 = vpack.c.b16 %v1890, %v1889
  %v2299 = vpack.c.b16 %v1892, %v1891
  %v2300 = vpack.c.b16 %v1894, %v1893
  %v2301 = vpack.c.b16 %v1896, %v1895
  %v2302 = vpack.c.b16 %v1898, %v1897
  %v2303 = vpack.c.b16 %v1900, %v1899
  %v2304 = vpack.c.b16 %v1902, %v1901
  %v2305 = vpack.c.b16 %v1904, %v1903
  %v2306 = vpack.c.b16 %v1906, %v1905
  %v2307 = vpack.c.b16 %v1908, %v1907
  %v2308 = vpack.c.b16 %v1910, %v1909
  %v2309 = vpack.c.b16 %v1912, %v1911
  %v2310 = vpack.c.b16 %v1914, %v1913
  %v2311 = vpack.c.b16 %v1916, %v1915
  %v2312 = vpack.c.b16 %v1918, %v1917
  %v2313 = vpack.c.b16 %v1920, %v1919
  %v2314 = vpack.c.b16 %v1922, %v1921
  %v2315 = vpack.c.b16 %v1924, %v1923
  %v2316 = vpack.c.b16 %v1926, %v1925
  %v2317 = vpack.c.b16 %v1928, %v1927
  %v2318 = vpack.c.b16 %v1930, %v1929
  %v2319 = vpack.c.b16 %v1932, %v1931
  %v2320 = vpack.c.b16 %v1934, %v1933
  %v2321 = vpack.c.b16 %v1936, %v1935
  %v2322 = vpack.c.b16 %v1938, %v1937
  %v2323 = vpack.c.b16 %v1940, %v1939
  %v2324 = vpack.c.b16 %v1942, %v1941
  %v2325 = vpack.c.b16 %v1944, %v1943
  %v2326 = vpack.c.b16 %v1946, %v1945
  %v2327 = vpack.c.b16 %v1948, %v1947
  %v2328 = vpack.c.b16 %v1950, %v1949
  %v2329 = vpack.c.b16 %v1952, %v1951
  %v2330 = vpack.c.b16 %v1954, %v1953
  %v2331 = vpack.c.b16 %v1956, %v1955
  %v2332 = vpack.c.b16 %v1958, %v1957
  %v2333 = vpack.c.b16 %v1960, %v1959
  %v2334 = vpack.c.b16 %v1962, %v1961
  %v2335 = vpack.c.b16 %v1964, %v1963
  %v2336 = vpack.c.b16 %v1966, %v1965
  %v2337 = vpack.c.b16 %v1968, %v1967
  %v2338 = vpack.c.b16 %v1970, %v1969
  %v2339 = vpack.c.b16 %v1972, %v1971
  %v2340 = vpack.c.b16 %v1974, %v1973
  %v2341 = vpack.c.b16 %v1976, %v1975
  %v2342 = vpack.c.b16 %v1978, %v1977
  %v2343 = vpack.c.b16 %v1980, %v1979
  %v2344 = vpack.c.b16 %v1982, %v1981
  %v2345 = vpack.c.b16 %v1984, %v1983
  %v2346 = vpack.c.b16 %v1986, %v1985
  %v2347 = vpack.c.b16 %v1988, %v1987
  %v2348 = vpack.c.b16 %v1990, %v1989
  %v2349 = vpack.c.b16 %v1992, %v1991
  %v2350 = vpack.c.b16 %v1994, %v1993
  %v2351 = vpack.c.b16 %v1996, %v1995
  %v2352 = vpack.c.b16 %v1998, %v1997
  %v2353 = vpack.c.b16 %v2000, %v1999
  %v2354 = vpack.c.b16 %v2002, %v2001
  %v2355 = vpack.c.b16 %v2004, %v2003
  %v2356 = vpack.c.b16 %v2006, %v2005
  %v2357 = vpack.c.b16 %v2008, %v2007
  %v2358 = vpack.c.b16 %v2010, %v2009
  %v2359 = vpack.c.b16 %v2012, %v2011
  %v2360 = vpack.c.b16 %v2014, %v2013
  %v2361 = vpack.c.b16 %v2016, %v2015
  %v2362 = vpack.c.b16 %v2018, %v2017
  %v2363 = vpack.c.b16 %v2020, %v2019
  %v2364 = vpack.c.b16 %v2022, %v2021
  %v2365 = vpack.c.b16 %v2024, %v2023
  %v2366 = vpack.c.b16 %v2026, %v2025
  %v2367 = vpack.c.b16 %v2028, %v2027
  %v2368 = vpack.c.b16 %v2030, %v2029
  %v2369 = vpack.c.b16 %v2032, %v2031
  %v2370 = vpack.c.b16 %v2034, %v2033
  %v2371 = vpack.c.b16 %v2036, %v2035
  %v2372 = vpack.c.b16 %v2038, %v2037
  %v2373 = vpack.c.b16 %v2040, %v2039
  %v2374 = vpack.c.b16 %v2042, %v2041
  %v2375 = vpack.c.b16 %v2044, %v2043
  %v2376 = vpack.c.b16 %v2046, %v2045
  %v2377 = vpack.c.b16 %v2048, %v2047
  %v2378 = vpack.c.b16 %v2050, %v2049
  %v2379 = vpack.c.b16 %v2052, %v2051
  %v2380 = vpack.c.b16 %v2054, %v2053
  %v2381 = vpack.c.b16 %v2056, %v2055
  %v2382 = vpack.c.b16 %v2058, %v2057
  %vm2707 = vcmask 523264
  %v2709 = vsel %vm2707, %v110, 0
  %2711 = vmatpush.bf16.msra.mxu0 %v2066
  %2712 = vmatpush.bf16.msra.mxu0 %v2065
  %2713 = vmatpush.bf16.msra.mxu0 %v2064
  %2714 = vmatpush.bf16.msra.mxu0 %v2063
  %2715 = vmatpush.bf16.msra.mxu0 %v2062
  %2716 = vmatpush.bf16.msra.mxu0 %v2061
  %2717 = vmatpush.bf16.msra.mxu0 %v2060
  %2718 = vmatpush.bf16.msra.mxu0 %v2059
  %2719 = vmatmul.bf16.gmra.mxu0 %v70
  %v2720 = vpop.f32.mrf.mxu0
  %v2721 = vadd.f32 %v761, %v2720
  %v2722 = vpop.f32.mrf.mxu0
  %2723 = vdwg.mxu0
  %2724 = vmatpush.bf16.msra.mxu0 %v2074
  %2725 = vmatpush.bf16.msra.mxu0 %v2073
  %2726 = vmatpush.bf16.msra.mxu0 %v2072
  %2727 = vmatpush.bf16.msra.mxu0 %v2071
  %2728 = vmatpush.bf16.msra.mxu0 %v2070
  %2729 = vmatpush.bf16.msra.mxu0 %v2069
  %2730 = vmatpush.bf16.msra.mxu0 %v2068
  %2731 = vmatpush.bf16.msra.mxu0 %v2067
  %2732 = vmatmul.bf16.gmra.mxu0 %v71
  %v2733 = vpop.f32.mrf.mxu0
  %v2734 = vadd.f32 %v2721, %v2733
  %v2735 = vpop.f32.mrf.mxu0
  %2736 = vdwg.mxu0
  %2737 = vmatpush.bf16.msra.mxu0 %v2082
  %2738 = vmatpush.bf16.msra.mxu0 %v2081
  %2739 = vmatpush.bf16.msra.mxu0 %v2080
  %2740 = vmatpush.bf16.msra.mxu0 %v2079
  %2741 = vmatpush.bf16.msra.mxu0 %v2078
  %2742 = vmatpush.bf16.msra.mxu0 %v2077
  %2743 = vmatpush.bf16.msra.mxu0 %v2076
  %2744 = vmatpush.bf16.msra.mxu0 %v2075
  %2745 = vmatmul.bf16.gmra.mxu0 %v72
  %v2746 = vpop.f32.mrf.mxu0
  %v2747 = vadd.f32 %v2734, %v2746
  %v2748 = vpop.f32.mrf.mxu0
  %2749 = vdwg.mxu0
  %2750 = vmatpush.bf16.msra.mxu0 %v2090
  %2751 = vmatpush.bf16.msra.mxu0 %v2089
  %2752 = vmatpush.bf16.msra.mxu0 %v2088
  %2753 = vmatpush.bf16.msra.mxu0 %v2087
  %2754 = vmatpush.bf16.msra.mxu0 %v2086
  %2755 = vmatpush.bf16.msra.mxu0 %v2085
  %2756 = vmatpush.bf16.msra.mxu0 %v2084
  %2757 = vmatpush.bf16.msra.mxu0 %v2083
  %2758 = vmatmul.bf16.gmra.mxu0 %v73
  %v2759 = vpop.f32.mrf.mxu0
  %v2760 = vadd.f32 %v2747, %v2759
  %v2761 = vpop.f32.mrf.mxu0
  %2762 = vdwg.mxu0
  %2763 = vmatpush.bf16.msra.mxu0 %v2098
  %2764 = vmatpush.bf16.msra.mxu0 %v2097
  %2765 = vmatpush.bf16.msra.mxu0 %v2096
  %2766 = vmatpush.bf16.msra.mxu0 %v2095
  %2767 = vmatpush.bf16.msra.mxu0 %v2094
  %2768 = vmatpush.bf16.msra.mxu0 %v2093
  %2769 = vmatpush.bf16.msra.mxu0 %v2092
  %2770 = vmatpush.bf16.msra.mxu0 %v2091
  %2771 = vmatmul.bf16.gmra.mxu0 %v74
  %v2772 = vpop.f32.mrf.mxu0
  %v2773 = vadd.f32 %v2760, %v2772
  %v2774 = vpop.f32.mrf.mxu0
  %2775 = vdwg.mxu0
  %2776 = vmatpush.bf16.msra.mxu0 %v2106
  %2777 = vmatpush.bf16.msra.mxu0 %v2105
  %2778 = vmatpush.bf16.msra.mxu0 %v2104
  %2779 = vmatpush.bf16.msra.mxu0 %v2103
  %2780 = vmatpush.bf16.msra.mxu0 %v2102
  %2781 = vmatpush.bf16.msra.mxu0 %v2101
  %2782 = vmatpush.bf16.msra.mxu0 %v2100
  %2783 = vmatpush.bf16.msra.mxu0 %v2099
  %2784 = vmatmul.bf16.gmra.mxu0 %v75
  %v2785 = vpop.f32.mrf.mxu0
  %v2786 = vadd.f32 %v2773, %v2785
  %v2787 = vpop.f32.mrf.mxu0
  %2788 = vdwg.mxu0
  %2789 = vmatpush.bf16.msra.mxu0 %v2114
  %2790 = vmatpush.bf16.msra.mxu0 %v2113
  %2791 = vmatpush.bf16.msra.mxu0 %v2112
  %2792 = vmatpush.bf16.msra.mxu0 %v2111
  %2793 = vmatpush.bf16.msra.mxu0 %v2110
  %2794 = vmatpush.bf16.msra.mxu0 %v2109
  %2795 = vmatpush.bf16.msra.mxu0 %v2108
  %2796 = vmatpush.bf16.msra.mxu0 %v2107
  %2797 = vmatmul.bf16.gmra.mxu0 %v76
  %v2798 = vpop.f32.mrf.mxu0
  %v2799 = vadd.f32 %v2786, %v2798
  %v2800 = vpop.f32.mrf.mxu0
  %2801 = vdwg.mxu0
  %2802 = vmatpush.bf16.msra.mxu0 %v2122
  %2803 = vmatpush.bf16.msra.mxu0 %v2121
  %2804 = vmatpush.bf16.msra.mxu0 %v2120
  %2805 = vmatpush.bf16.msra.mxu0 %v2119
  %2806 = vmatpush.bf16.msra.mxu0 %v2118
  %2807 = vmatpush.bf16.msra.mxu0 %v2117
  %2808 = vmatpush.bf16.msra.mxu0 %v2116
  %2809 = vmatpush.bf16.msra.mxu0 %v2115
  %2810 = vmatmul.bf16.gmra.mxu0 %v77
  %v2811 = vpop.f32.mrf.mxu0
  %v2812 = vadd.f32 %v2799, %v2811
  %v2813 = vpop.f32.mrf.mxu0
  %2814 = vdwg.mxu0
  %2815 = vmatpush.bf16.msra.mxu0 %v2130
  %2816 = vmatpush.bf16.msra.mxu0 %v2129
  %2817 = vmatpush.bf16.msra.mxu0 %v2128
  %2818 = vmatpush.bf16.msra.mxu0 %v2127
  %2819 = vmatpush.bf16.msra.mxu0 %v2126
  %2820 = vmatpush.bf16.msra.mxu0 %v2125
  %2821 = vmatpush.bf16.msra.mxu0 %v2124
  %2822 = vmatpush.bf16.msra.mxu0 %v2123
  %2823 = vmatmul.bf16.gmra.mxu0 %v78
  %v2824 = vpop.f32.mrf.mxu0
  %v2825 = vadd.f32 %v2812, %v2824
  %v2826 = vpop.f32.mrf.mxu0
  %2827 = vdwg.mxu0
  %2828 = vmatpush.bf16.msra.mxu0 %v2138
  %2829 = vmatpush.bf16.msra.mxu0 %v2137
  %2830 = vmatpush.bf16.msra.mxu0 %v2136
  %2831 = vmatpush.bf16.msra.mxu0 %v2135
  %2832 = vmatpush.bf16.msra.mxu0 %v2134
  %2833 = vmatpush.bf16.msra.mxu0 %v2133
  %2834 = vmatpush.bf16.msra.mxu0 %v2132
  %2835 = vmatpush.bf16.msra.mxu0 %v2131
  %2836 = vmatmul.bf16.gmra.mxu0 %v79
  %v2837 = vpop.f32.mrf.mxu0
  %v2838 = vadd.f32 %v2825, %v2837
  %v2839 = vpop.f32.mrf.mxu0
  %2840 = vdwg.mxu0
  %2841 = vmatpush.bf16.msra.mxu0 %v2146
  %2842 = vmatpush.bf16.msra.mxu0 %v2145
  %2843 = vmatpush.bf16.msra.mxu0 %v2144
  %2844 = vmatpush.bf16.msra.mxu0 %v2143
  %2845 = vmatpush.bf16.msra.mxu0 %v2142
  %2846 = vmatpush.bf16.msra.mxu0 %v2141
  %2847 = vmatpush.bf16.msra.mxu0 %v2140
  %2848 = vmatpush.bf16.msra.mxu0 %v2139
  %2849 = vmatmul.bf16.gmra.mxu0 %v80
  %v2850 = vpop.f32.mrf.mxu0
  %v2851 = vadd.f32 %v2838, %v2850
  %v2852 = vpop.f32.mrf.mxu0
  %2853 = vdwg.mxu0
  %2854 = vmatpush.bf16.msra.mxu0 %v2154
  %2855 = vmatpush.bf16.msra.mxu0 %v2153
  %2856 = vmatpush.bf16.msra.mxu0 %v2152
  %2857 = vmatpush.bf16.msra.mxu0 %v2151
  %2858 = vmatpush.bf16.msra.mxu0 %v2150
  %2859 = vmatpush.bf16.msra.mxu0 %v2149
  %2860 = vmatpush.bf16.msra.mxu0 %v2148
  %2861 = vmatpush.bf16.msra.mxu0 %v2147
  %2862 = vmatmul.bf16.gmra.mxu0 %v81
  %v2863 = vpop.f32.mrf.mxu0
  %v2864 = vadd.f32 %v2851, %v2863
  %v2865 = vpop.f32.mrf.mxu0
  %2866 = vdwg.mxu0
  %2867 = vmatpush.bf16.msra.mxu0 %v2162
  %2868 = vmatpush.bf16.msra.mxu0 %v2161
  %2869 = vmatpush.bf16.msra.mxu0 %v2160
  %2870 = vmatpush.bf16.msra.mxu0 %v2159
  %2871 = vmatpush.bf16.msra.mxu0 %v2158
  %2872 = vmatpush.bf16.msra.mxu0 %v2157
  %2873 = vmatpush.bf16.msra.mxu0 %v2156
  %2874 = vmatpush.bf16.msra.mxu0 %v2155
  %2875 = vmatmul.bf16.gmra.mxu0 %v82
  %v2876 = vpop.f32.mrf.mxu0
  %v2877 = vadd.f32 %v2864, %v2876
  %v2878 = vpop.f32.mrf.mxu0
  %2879 = vdwg.mxu0
  %2880 = vmatpush.bf16.msra.mxu0 %v2170
  %2881 = vmatpush.bf16.msra.mxu0 %v2169
  %2882 = vmatpush.bf16.msra.mxu0 %v2168
  %2883 = vmatpush.bf16.msra.mxu0 %v2167
  %2884 = vmatpush.bf16.msra.mxu0 %v2166
  %2885 = vmatpush.bf16.msra.mxu0 %v2165
  %2886 = vmatpush.bf16.msra.mxu0 %v2164
  %2887 = vmatpush.bf16.msra.mxu0 %v2163
  %2888 = vmatmul.bf16.gmra.mxu0 %v83
  %v2889 = vpop.f32.mrf.mxu0
  %v2890 = vadd.f32 %v2877, %v2889
  %v2891 = vpop.f32.mrf.mxu0
  %2892 = vdwg.mxu0
  %2893 = vmatpush.bf16.msra.mxu0 %v2178
  %2894 = vmatpush.bf16.msra.mxu0 %v2177
  %2895 = vmatpush.bf16.msra.mxu0 %v2176
  %2896 = vmatpush.bf16.msra.mxu0 %v2175
  %2897 = vmatpush.bf16.msra.mxu0 %v2174
  %2898 = vmatpush.bf16.msra.mxu0 %v2173
  %2899 = vmatpush.bf16.msra.mxu0 %v2172
  %2900 = vmatpush.bf16.msra.mxu0 %v2171
  %2901 = vmatmul.bf16.gmra.mxu0 %v84
  %v2902 = vpop.f32.mrf.mxu0
  %v2903 = vadd.f32 %v2890, %v2902
  %v2904 = vpop.f32.mrf.mxu0
  %2905 = vdwg.mxu0
  %2906 = vmatpush.bf16.msra.mxu0 %v2186
  %2907 = vmatpush.bf16.msra.mxu0 %v2185
  %2908 = vmatpush.bf16.msra.mxu0 %v2184
  %2909 = vmatpush.bf16.msra.mxu0 %v2183
  %2910 = vmatpush.bf16.msra.mxu0 %v2182
  %2911 = vmatpush.bf16.msra.mxu0 %v2181
  %2912 = vmatpush.bf16.msra.mxu0 %v2180
  %2913 = vmatpush.bf16.msra.mxu0 %v2179
  %2914 = vmatmul.bf16.gmra.mxu0 %v85
  %v2915 = vpop.f32.mrf.mxu0
  %v2916 = vadd.f32 %v2903, %v2915
  %v2917 = vpop.f32.mrf.mxu0
  %2918 = vdwg.mxu0
  %2919 = vmatpush.bf16.msra.mxu0 %v2194
  %2920 = vmatpush.bf16.msra.mxu0 %v2193
  %2921 = vmatpush.bf16.msra.mxu0 %v2192
  %2922 = vmatpush.bf16.msra.mxu0 %v2191
  %2923 = vmatpush.bf16.msra.mxu0 %v2190
  %2924 = vmatpush.bf16.msra.mxu0 %v2189
  %2925 = vmatpush.bf16.msra.mxu0 %v2188
  %2926 = vmatpush.bf16.msra.mxu0 %v2187
  %2927 = vmatmul.bf16.gmra.mxu0 %v86
  %v2928 = vpop.f32.mrf.mxu0
  %v2929 = vadd.f32 %v2916, %v2928
  %v2930 = vpop.f32.mrf.mxu0
  %2931 = vdwg.mxu0
  %2932 = vmatpush.bf16.msra.mxu0 %v2202
  %2933 = vmatpush.bf16.msra.mxu0 %v2201
  %2934 = vmatpush.bf16.msra.mxu0 %v2200
  %2935 = vmatpush.bf16.msra.mxu0 %v2199
  %2936 = vmatpush.bf16.msra.mxu0 %v2198
  %2937 = vmatpush.bf16.msra.mxu0 %v2197
  %2938 = vmatpush.bf16.msra.mxu0 %v2196
  %2939 = vmatpush.bf16.msra.mxu0 %v2195
  %2940 = vmatmul.bf16.gmra.mxu0 %v87
  %v2941 = vpop.f32.mrf.mxu0
  %v2942 = vadd.f32 %v2929, %v2941
  %v2943 = vpop.f32.mrf.mxu0
  %2944 = vdwg.mxu0
  %2945 = vmatpush.bf16.msra.mxu0 %v2210
  %2946 = vmatpush.bf16.msra.mxu0 %v2209
  %2947 = vmatpush.bf16.msra.mxu0 %v2208
  %2948 = vmatpush.bf16.msra.mxu0 %v2207
  %2949 = vmatpush.bf16.msra.mxu0 %v2206
  %2950 = vmatpush.bf16.msra.mxu0 %v2205
  %2951 = vmatpush.bf16.msra.mxu0 %v2204
  %2952 = vmatpush.bf16.msra.mxu0 %v2203
  %2953 = vmatmul.bf16.gmra.mxu0 %v88
  %v2954 = vpop.f32.mrf.mxu0
  %v2955 = vadd.f32 %v2942, %v2954
  %v2956 = vpop.f32.mrf.mxu0
  %2957 = vdwg.mxu0
  %2958 = vmatpush.bf16.msra.mxu0 %v2218
  %2959 = vmatpush.bf16.msra.mxu0 %v2217
  %2960 = vmatpush.bf16.msra.mxu0 %v2216
  %2961 = vmatpush.bf16.msra.mxu0 %v2215
  %2962 = vmatpush.bf16.msra.mxu0 %v2214
  %2963 = vmatpush.bf16.msra.mxu0 %v2213
  %2964 = vmatpush.bf16.msra.mxu0 %v2212
  %2965 = vmatpush.bf16.msra.mxu0 %v2211
  %2966 = vmatmul.bf16.gmra.mxu0 %v89
  %v2967 = vpop.f32.mrf.mxu0
  %v2968 = vadd.f32 %v2955, %v2967
  %v2969 = vpop.f32.mrf.mxu0
  %2970 = vdwg.mxu0
  %2971 = vmatpush.bf16.msra.mxu0 %v2226
  %2972 = vmatpush.bf16.msra.mxu0 %v2225
  %2973 = vmatpush.bf16.msra.mxu0 %v2224
  %2974 = vmatpush.bf16.msra.mxu0 %v2223
  %2975 = vmatpush.bf16.msra.mxu0 %v2222
  %2976 = vmatpush.bf16.msra.mxu0 %v2221
  %2977 = vmatpush.bf16.msra.mxu0 %v2220
  %2978 = vmatpush.bf16.msra.mxu0 %v2219
  %2979 = vmatmul.bf16.gmra.mxu0 %v90
  %v2980 = vpop.f32.mrf.mxu0
  %v2981 = vadd.f32 %v2968, %v2980
  %v2982 = vpop.f32.mrf.mxu0
  %2983 = vdwg.mxu0
  %2984 = vmatpush.bf16.msra.mxu0 %v2234
  %2985 = vmatpush.bf16.msra.mxu0 %v2233
  %2986 = vmatpush.bf16.msra.mxu0 %v2232
  %2987 = vmatpush.bf16.msra.mxu0 %v2231
  %2988 = vmatpush.bf16.msra.mxu0 %v2230
  %2989 = vmatpush.bf16.msra.mxu0 %v2229
  %2990 = vmatpush.bf16.msra.mxu0 %v2228
  %2991 = vmatpush.bf16.msra.mxu0 %v2227
  %2992 = vmatmul.bf16.gmra.mxu0 %v91
  %v2993 = vpop.f32.mrf.mxu0
  %v2994 = vadd.f32 %v2981, %v2993
  %v2995 = vpop.f32.mrf.mxu0
  %2996 = vdwg.mxu0
  %2997 = vmatpush.bf16.msra.mxu0 %v2242
  %2998 = vmatpush.bf16.msra.mxu0 %v2241
  %2999 = vmatpush.bf16.msra.mxu0 %v2240
  %3000 = vmatpush.bf16.msra.mxu0 %v2239
  %3001 = vmatpush.bf16.msra.mxu0 %v2238
  %3002 = vmatpush.bf16.msra.mxu0 %v2237
  %3003 = vmatpush.bf16.msra.mxu0 %v2236
  %3004 = vmatpush.bf16.msra.mxu0 %v2235
  %3005 = vmatmul.bf16.gmra.mxu0 %v92
  %v3006 = vpop.f32.mrf.mxu0
  %v3007 = vadd.f32 %v2994, %v3006
  %v3008 = vpop.f32.mrf.mxu0
  %3009 = vdwg.mxu0
  %3010 = vmatpush.bf16.msra.mxu0 %v2250
  %3011 = vmatpush.bf16.msra.mxu0 %v2249
  %3012 = vmatpush.bf16.msra.mxu0 %v2248
  %3013 = vmatpush.bf16.msra.mxu0 %v2247
  %3014 = vmatpush.bf16.msra.mxu0 %v2246
  %3015 = vmatpush.bf16.msra.mxu0 %v2245
  %3016 = vmatpush.bf16.msra.mxu0 %v2244
  %3017 = vmatpush.bf16.msra.mxu0 %v2243
  %3018 = vmatmul.bf16.gmra.mxu0 %v93
  %v3019 = vpop.f32.mrf.mxu0
  %v3020 = vadd.f32 %v3007, %v3019
  %v3021 = vpop.f32.mrf.mxu0
  %3022 = vdwg.mxu0
  %3023 = vmatpush.bf16.msra.mxu0 %v2258
  %3024 = vmatpush.bf16.msra.mxu0 %v2257
  %3025 = vmatpush.bf16.msra.mxu0 %v2256
  %3026 = vmatpush.bf16.msra.mxu0 %v2255
  %3027 = vmatpush.bf16.msra.mxu0 %v2254
  %3028 = vmatpush.bf16.msra.mxu0 %v2253
  %3029 = vmatpush.bf16.msra.mxu0 %v2252
  %3030 = vmatpush.bf16.msra.mxu0 %v2251
  %3031 = vmatmul.bf16.gmra.mxu0 %v94
  %v3032 = vpop.f32.mrf.mxu0
  %v3033 = vadd.f32 %v3020, %v3032
  %v3034 = vpop.f32.mrf.mxu0
  %3035 = vdwg.mxu0
  %3036 = vmatpush.bf16.msra.mxu0 %v2266
  %3037 = vmatpush.bf16.msra.mxu0 %v2265
  %3038 = vmatpush.bf16.msra.mxu0 %v2264
  %3039 = vmatpush.bf16.msra.mxu0 %v2263
  %3040 = vmatpush.bf16.msra.mxu0 %v2262
  %3041 = vmatpush.bf16.msra.mxu0 %v2261
  %3042 = vmatpush.bf16.msra.mxu0 %v2260
  %3043 = vmatpush.bf16.msra.mxu0 %v2259
  %3044 = vmatmul.bf16.gmra.mxu0 %v95
  %v3045 = vpop.f32.mrf.mxu0
  %v3046 = vadd.f32 %v3033, %v3045
  %v3047 = vpop.f32.mrf.mxu0
  %3048 = vdwg.mxu0
  %3049 = vmatpush.bf16.msra.mxu0 %v2274
  %3050 = vmatpush.bf16.msra.mxu0 %v2273
  %3051 = vmatpush.bf16.msra.mxu0 %v2272
  %3052 = vmatpush.bf16.msra.mxu0 %v2271
  %3053 = vmatpush.bf16.msra.mxu0 %v2270
  %3054 = vmatpush.bf16.msra.mxu0 %v2269
  %3055 = vmatpush.bf16.msra.mxu0 %v2268
  %3056 = vmatpush.bf16.msra.mxu0 %v2267
  %3057 = vmatmul.bf16.gmra.mxu0 %v96
  %v3058 = vpop.f32.mrf.mxu0
  %v3059 = vadd.f32 %v3046, %v3058
  %v3060 = vpop.f32.mrf.mxu0
  %3061 = vdwg.mxu0
  %3062 = vmatpush.bf16.msra.mxu0 %v2282
  %3063 = vmatpush.bf16.msra.mxu0 %v2281
  %3064 = vmatpush.bf16.msra.mxu0 %v2280
  %3065 = vmatpush.bf16.msra.mxu0 %v2279
  %3066 = vmatpush.bf16.msra.mxu0 %v2278
  %3067 = vmatpush.bf16.msra.mxu0 %v2277
  %3068 = vmatpush.bf16.msra.mxu0 %v2276
  %3069 = vmatpush.bf16.msra.mxu0 %v2275
  %3070 = vmatmul.bf16.gmra.mxu0 %v97
  %v3071 = vpop.f32.mrf.mxu0
  %v3072 = vadd.f32 %v3059, %v3071
  %v3073 = vpop.f32.mrf.mxu0
  %3074 = vdwg.mxu0
  %3075 = vmatpush.bf16.msra.mxu0 %v2290
  %3076 = vmatpush.bf16.msra.mxu0 %v2289
  %3077 = vmatpush.bf16.msra.mxu0 %v2288
  %3078 = vmatpush.bf16.msra.mxu0 %v2287
  %3079 = vmatpush.bf16.msra.mxu0 %v2286
  %3080 = vmatpush.bf16.msra.mxu0 %v2285
  %3081 = vmatpush.bf16.msra.mxu0 %v2284
  %3082 = vmatpush.bf16.msra.mxu0 %v2283
  %3083 = vmatmul.bf16.gmra.mxu0 %v98
  %v3084 = vpop.f32.mrf.mxu0
  %v3085 = vadd.f32 %v3072, %v3084
  %v3086 = vpop.f32.mrf.mxu0
  %3087 = vdwg.mxu0
  %3088 = vmatpush.bf16.msra.mxu0 %v2298
  %3089 = vmatpush.bf16.msra.mxu0 %v2297
  %3090 = vmatpush.bf16.msra.mxu0 %v2296
  %3091 = vmatpush.bf16.msra.mxu0 %v2295
  %3092 = vmatpush.bf16.msra.mxu0 %v2294
  %3093 = vmatpush.bf16.msra.mxu0 %v2293
  %3094 = vmatpush.bf16.msra.mxu0 %v2292
  %3095 = vmatpush.bf16.msra.mxu0 %v2291
  %3096 = vmatmul.bf16.gmra.mxu0 %v99
  %v3097 = vpop.f32.mrf.mxu0
  %v3098 = vadd.f32 %v3085, %v3097
  %v3099 = vpop.f32.mrf.mxu0
  %3100 = vdwg.mxu0
  %3101 = vmatpush.bf16.msra.mxu0 %v2306
  %3102 = vmatpush.bf16.msra.mxu0 %v2305
  %3103 = vmatpush.bf16.msra.mxu0 %v2304
  %3104 = vmatpush.bf16.msra.mxu0 %v2303
  %3105 = vmatpush.bf16.msra.mxu0 %v2302
  %3106 = vmatpush.bf16.msra.mxu0 %v2301
  %3107 = vmatpush.bf16.msra.mxu0 %v2300
  %3108 = vmatpush.bf16.msra.mxu0 %v2299
  %3109 = vmatmul.bf16.gmra.mxu0 %v100
  %v3110 = vpop.f32.mrf.mxu0
  %v3111 = vadd.f32 %v3098, %v3110
  %v3112 = vpop.f32.mrf.mxu0
  %3113 = vdwg.mxu0
  %3114 = vmatpush.bf16.msra.mxu0 %v2314
  %3115 = vmatpush.bf16.msra.mxu0 %v2313
  %3116 = vmatpush.bf16.msra.mxu0 %v2312
  %3117 = vmatpush.bf16.msra.mxu0 %v2311
  %3118 = vmatpush.bf16.msra.mxu0 %v2310
  %3119 = vmatpush.bf16.msra.mxu0 %v2309
  %3120 = vmatpush.bf16.msra.mxu0 %v2308
  %3121 = vmatpush.bf16.msra.mxu0 %v2307
  %3122 = vmatmul.bf16.gmra.mxu0 %v101
  %v3123 = vpop.f32.mrf.mxu0
  %v3124 = vadd.f32 %v3111, %v3123
  %v3125 = vpop.f32.mrf.mxu0
  %3126 = vdwg.mxu0
  %3127 = vmatpush.bf16.msra.mxu0 %v2322
  %3128 = vmatpush.bf16.msra.mxu0 %v2321
  %3129 = vmatpush.bf16.msra.mxu0 %v2320
  %3130 = vmatpush.bf16.msra.mxu0 %v2319
  %3131 = vmatpush.bf16.msra.mxu0 %v2318
  %3132 = vmatpush.bf16.msra.mxu0 %v2317
  %3133 = vmatpush.bf16.msra.mxu0 %v2316
  %3134 = vmatpush.bf16.msra.mxu0 %v2315
  %3135 = vmatmul.bf16.gmra.mxu0 %v102
  %v3136 = vpop.f32.mrf.mxu0
  %v3137 = vadd.f32 %v3124, %v3136
  %v3138 = vpop.f32.mrf.mxu0
  %3139 = vdwg.mxu0
  %3140 = vmatpush.bf16.msra.mxu0 %v2330
  %3141 = vmatpush.bf16.msra.mxu0 %v2329
  %3142 = vmatpush.bf16.msra.mxu0 %v2328
  %3143 = vmatpush.bf16.msra.mxu0 %v2327
  %3144 = vmatpush.bf16.msra.mxu0 %v2326
  %3145 = vmatpush.bf16.msra.mxu0 %v2325
  %3146 = vmatpush.bf16.msra.mxu0 %v2324
  %3147 = vmatpush.bf16.msra.mxu0 %v2323
  %3148 = vmatmul.bf16.gmra.mxu0 %v103
  %v3149 = vpop.f32.mrf.mxu0
  %v3150 = vadd.f32 %v3137, %v3149
  %v3151 = vpop.f32.mrf.mxu0
  %3152 = vdwg.mxu0
  %3153 = vmatpush.bf16.msra.mxu0 %v2338
  %3154 = vmatpush.bf16.msra.mxu0 %v2337
  %3155 = vmatpush.bf16.msra.mxu0 %v2336
  %3156 = vmatpush.bf16.msra.mxu0 %v2335
  %3157 = vmatpush.bf16.msra.mxu0 %v2334
  %3158 = vmatpush.bf16.msra.mxu0 %v2333
  %3159 = vmatpush.bf16.msra.mxu0 %v2332
  %3160 = vmatpush.bf16.msra.mxu0 %v2331
  %3161 = vmatmul.bf16.gmra.mxu0 %v104
  %v3162 = vpop.f32.mrf.mxu0
  %v3163 = vadd.f32 %v3150, %v3162
  %v3164 = vpop.f32.mrf.mxu0
  %3165 = vdwg.mxu0
  %3166 = vmatpush.bf16.msra.mxu0 %v2346
  %3167 = vmatpush.bf16.msra.mxu0 %v2345
  %3168 = vmatpush.bf16.msra.mxu0 %v2344
  %3169 = vmatpush.bf16.msra.mxu0 %v2343
  %3170 = vmatpush.bf16.msra.mxu0 %v2342
  %3171 = vmatpush.bf16.msra.mxu0 %v2341
  %3172 = vmatpush.bf16.msra.mxu0 %v2340
  %3173 = vmatpush.bf16.msra.mxu0 %v2339
  %3174 = vmatmul.bf16.gmra.mxu0 %v105
  %v3175 = vpop.f32.mrf.mxu0
  %v3176 = vadd.f32 %v3163, %v3175
  %v3177 = vpop.f32.mrf.mxu0
  %3178 = vdwg.mxu0
  %3179 = vmatpush.bf16.msra.mxu0 %v2354
  %3180 = vmatpush.bf16.msra.mxu0 %v2353
  %3181 = vmatpush.bf16.msra.mxu0 %v2352
  %3182 = vmatpush.bf16.msra.mxu0 %v2351
  %3183 = vmatpush.bf16.msra.mxu0 %v2350
  %3184 = vmatpush.bf16.msra.mxu0 %v2349
  %3185 = vmatpush.bf16.msra.mxu0 %v2348
  %3186 = vmatpush.bf16.msra.mxu0 %v2347
  %3187 = vmatmul.bf16.gmra.mxu0 %v106
  %v3188 = vpop.f32.mrf.mxu0
  %v3189 = vadd.f32 %v3176, %v3188
  %v3190 = vpop.f32.mrf.mxu0
  %3191 = vdwg.mxu0
  %3192 = vmatpush.bf16.msra.mxu0 %v2362
  %3193 = vmatpush.bf16.msra.mxu0 %v2361
  %3194 = vmatpush.bf16.msra.mxu0 %v2360
  %3195 = vmatpush.bf16.msra.mxu0 %v2359
  %3196 = vmatpush.bf16.msra.mxu0 %v2358
  %3197 = vmatpush.bf16.msra.mxu0 %v2357
  %3198 = vmatpush.bf16.msra.mxu0 %v2356
  %3199 = vmatpush.bf16.msra.mxu0 %v2355
  %3200 = vmatmul.bf16.gmra.mxu0 %v107
  %v3201 = vpop.f32.mrf.mxu0
  %v3202 = vadd.f32 %v3189, %v3201
  %v3203 = vpop.f32.mrf.mxu0
  %3204 = vdwg.mxu0
  %3205 = vmatpush.bf16.msra.mxu0 %v2370
  %3206 = vmatpush.bf16.msra.mxu0 %v2369
  %3207 = vmatpush.bf16.msra.mxu0 %v2368
  %3208 = vmatpush.bf16.msra.mxu0 %v2367
  %3209 = vmatpush.bf16.msra.mxu0 %v2366
  %3210 = vmatpush.bf16.msra.mxu0 %v2365
  %3211 = vmatpush.bf16.msra.mxu0 %v2364
  %3212 = vmatpush.bf16.msra.mxu0 %v2363
  %3213 = vmatmul.bf16.gmra.mxu0 %v108
  %v3214 = vpop.f32.mrf.mxu0
  %v3215 = vadd.f32 %v3202, %v3214
  %v3216 = vpop.f32.mrf.mxu0
  %3217 = vdwg.mxu0
  %3218 = vmatpush.bf16.msra.mxu0 %v2378
  %3219 = vmatpush.bf16.msra.mxu0 %v2377
  %3220 = vmatpush.bf16.msra.mxu0 %v2376
  %3221 = vmatpush.bf16.msra.mxu0 %v2375
  %3222 = vmatpush.bf16.msra.mxu0 %v2374
  %3223 = vmatpush.bf16.msra.mxu0 %v2373
  %3224 = vmatpush.bf16.msra.mxu0 %v2372
  %3225 = vmatpush.bf16.msra.mxu0 %v2371
  %3226 = vmatmul.bf16.gmra.mxu0 %v109
  %v3227 = vpop.f32.mrf.mxu0
  %v3228 = vadd.f32 %v3215, %v3227
  %v3229 = vpop.f32.mrf.mxu0
  %3230 = vdwg.mxu0
  %3231 = vmatpush.bf16.msra.mxu0 0
  %3232 = vmatpush.bf16.msra.mxu0 0
  %3233 = vmatpush.bf16.msra.mxu0 0
  %3234 = vmatpush.bf16.msra.mxu0 0
  %3235 = vmatpush.bf16.msra.mxu0 %v2382
  %3236 = vmatpush.bf16.msra.mxu0 %v2381
  %3237 = vmatpush.bf16.msra.mxu0 %v2380
  %3238 = vmatpush.bf16.msra.mxu0 %v2379
  %3239 = vmatmul.bf16.gmra.mxu0 %v2709
  %v3240 = vpop.f32.mrf.mxu0
  %v3241 = vadd.f32 %v3228, %v3240
  %v3242 = vpop.f32.mrf.mxu0
  %3243 = vdwg.mxu0
  %v3244 = vmax.f32 %v3241, 0.0
  %v3245 = vld [vmem:[%s3] sm:$0xff]
  %v3246 = vld [vmem:[%s3 + $0x8] sm:$0xff]
  %v3247 = vld [vmem:[%s3 + $0x10] sm:$0xff]
  %v3248 = vld [vmem:[%s3 + $0x18] sm:$0xff]
  %v3249 = vld [vmem:[%s3 + $0x20] sm:$0xff]
  %v3250 = vld [vmem:[%s3 + $0x28] sm:$0xff]
  %v3251 = vld [vmem:[%s3 + $0x30] sm:$0xff]
  %v3252 = vld [vmem:[%s3 + $0x38] sm:$0xff]
  %v3253 = vld [vmem:[%s3 + $0x40] sm:$0xff]
  %v3254 = vld [vmem:[%s3 + $0x48] sm:$0xff]
  %v3255 = vld [vmem:[%s3 + $0x50] sm:$0xff]
  %v3256 = vld [vmem:[%s3 + $0x58] sm:$0xff]
  %v3257 = vld [vmem:[%s3 + $0x60] sm:$0xf]
  %v3258 = vld [vmem:[%s4] sm:$0x1]
  %v3260 = vperm.slane %v3258, 0
  %vm3262 = vcmask 818176
  %v3264 = vsel %vm3262, %v3244, 0
  %vm3266 = vcmask 1043456
  %v3268 = vsel %vm3266, %v3257, 0
  %3270 = vmatpush.msra.mxu0 0.0
  %3271 = vmatpush.msra.mxu0 0.0
  %3272 = vmatpush.msra.mxu0 0.0
  %3273 = vmatpush.msra.mxu0 %v3268
  %3274 = vmatpush.msra.mxu0 %v3256
  %3275 = vmatpush.msra.mxu0 %v3255
  %3276 = vmatpush.msra.mxu0 %v3254
  %3277 = vmatpush.msra.mxu0 %v3253
  %3278 = vmatpush.msra.mxu0 %v3252
  %3279 = vmatpush.msra.mxu0 %v3251
  %3280 = vmatpush.msra.mxu0 %v3250
  %3281 = vmatpush.msra.mxu0 %v3249
  %3282 = vmatpush.msra.mxu0 %v3248
  %3283 = vmatpush.msra.mxu0 %v3247
  %3284 = vmatpush.msra.mxu0 %v3246
  %3285 = vmatpush.msra.mxu0 %v3245
  %3286 = vmatmul.f32.gmra.mxu0 %v3264
  %v3287 = vpop.f32.mrf.mxu0
  %v3288 = vadd.f32 %v3260, %v3287
  %3289 = vdwg.mxu0
  %v3290 = vmax.f32 %v3288, 0.0
  %v3291 = vld [vmem:[%s5] sm:$0xff]
  %v3292 = vld [vmem:[%s5 + $0x8] sm:$0xff]
  %v3293 = vld [vmem:[%s5 + $0x10] sm:$0xff]
  %v3294 = vld [vmem:[%s5 + $0x18] sm:$0x7f]
  %v3295 = vld [vmem:[#allocation2] sm:$0x1]
  %v3297 = vperm.slane %v3295, 0
  %vm3299 = vcmask 252928
  %v3301 = vsel %vm3299, %v3290, 0
  %vm3303 = vcmask 1046528
  %v3305 = vsel %vm3303, %v3294, 0
  %3307 = vmatpush.msra.mxu0 0.0
  %3308 = vmatpush.msra.mxu0 0.0
  %3309 = vmatpush.msra.mxu0 0.0
  %3310 = vmatpush.msra.mxu0 0.0
  %3311 = vmatpush.msra.mxu0 0.0
  %3312 = vmatpush.msra.mxu0 0.0
  %3313 = vmatpush.msra.mxu0 0.0
  %3314 = vmatpush.msra.mxu0 0.0
  %3315 = vmatpush.msra.mxu0 0.0
  %3316 = vmatpush.msra.mxu0 0.0
  %3317 = vmatpush.msra.mxu0 0.0
  %3318 = vmatpush.msra.mxu0 0.0
  %3319 = vmatpush.msra.mxu0 %v3305
  %3320 = vmatpush.msra.mxu0 %v3293
  %3321 = vmatpush.msra.mxu0 %v3292
  %3322 = vmatpush.msra.mxu0 %v3291
  %3323 = vmatmul.f32.gmra.mxu0 %v3301
  %v3324 = vpop.f32.mrf.mxu0
  %v3325 = vadd.f32 %v3297, %v3324
  %3326 = vdwg.mxu0
  %v3327 = vsub.f32 0.0, %v3325
  %v3328 = vmul.f32 %v3327, 1.442695
  %v3329 = vpow.pop %v3328
  %v3330 = vadd.f32 %v3329, 1.0
  %v3331 = vrcp.pop %v3330
  %vm3332 = vcmask 7168
  %3333 = vst.msk [vmem:[%s7] sm:$0xff] %vm3332, %v3331
  // Predicated region
  $region30: #{tpu_custom_call.1} parent=0 // pred_check
    _
  $region31: #{tpu_custom_call.1} parent=0 // pred_check_branch
    %3335 = sbr.rel (0) target = $region33
  $region32: #{tpu_custom_call.1} parent=0 // pred_region
    _
  $region33: #{tpu_custom_call.1} parent=0 // pred_fallthru
    _
  // Predicated region
  $region34: #{tpu_custom_call.1} parent=0 // pred_check
    _
  $region35: #{tpu_custom_call.1} parent=0 // pred_check_branch
    %3337 = sbr.rel (0) target = $region37
  $region36: #{tpu_custom_call.1} parent=0 // pred_region
    _
  $region37: #{tpu_custom_call.1} parent=0 // pred_fallthru
    _

</llo_original>
